<compile_context>
chip_gen: v7x
topology: tpu7x:2x2x1
jax: 0.10.0
libtpu: 0.0.40
codegen_flags: <defaults>
</compile_context>

<pallas_src>
import jax
import jax.numpy as jnp
from jax.experimental import pallas as pl
from jax.experimental.pallas import tpu as pltpu

IN_DIM = 1000
FC_SIZES = (256, 128, 256, 128, 256, 8)
OUT_DIM = FC_SIZES[-1]


def _mlp_kernel(x_ref,
                w1_ref, b1_ref, w2_ref, b2_ref, w3_ref, b3_ref,
                w4_ref, b4_ref, w5_ref, b5_ref, w6_ref, b6_ref,
                o_ref):
    # Weights are bf16; matmuls accumulate in f32 on the MXU, all elementwise
    # math (bias add / ReLU / sigmoid) stays in f32.
    def _hidden(h_bf16, w_ref, b_ref):
        y = jnp.dot(h_bf16, w_ref[...], preferred_element_type=jnp.float32)
        return jnp.maximum(y + b_ref[...], 0.0).astype(jnp.bfloat16)

    # f32 -> bf16 cast done in-kernel (VPU slack) instead of a wrapper-side
    # XLA pad/cast pass over x in HBM.
    h = x_ref[...].astype(jnp.bfloat16)                 # [TB, 1000]
    h = _hidden(h, w1_ref, b1_ref)   # fc1 + ReLU (d1 = identity in eval)
    h = _hidden(h, w2_ref, b2_ref)   # fc2 + ReLU (d2 = identity in eval)
    h = _hidden(h, w3_ref, b3_ref)   # fc3 + ReLU (d3 = identity in eval)
    h = _hidden(h, w4_ref, b4_ref)   # fc4 + ReLU (d4 = identity in eval)
    h = _hidden(h, w5_ref, b5_ref)   # fc5 + ReLU

    # fc6: matmul + bias, then sigmoid (eval-mode output). Store only the 8
    # real columns (masked vst is negligible vs. the 6 matmuls per tile).
    logits = jnp.dot(h, w6_ref[...], preferred_element_type=jnp.float32) + b6_ref[...]
    o_ref[...] = jax.nn.sigmoid(logits)


def _round_up(v, m):
    return ((v + m - 1) // m) * m


def prepare_params(params):
    """One-time parameter prep (hoisted out of the per-call forward).

    params: list of 6 (W[in, out] f32, b[1, out] f32) pairs.
    Returns a tuple of (W bf16, b f32) pairs ready for the kernel.
    """
    prepared = []
    for w, b in params:
        prepared.append((jnp.asarray(w, dtype=jnp.bfloat16),
                         jnp.asarray(b, dtype=jnp.float32)))
    return tuple(prepared)


def _choose_tile(b_pad):
    # Keep >= 2 grid steps whenever B allows it so the "parallel" batch axis
    # actually spans both v7x TensorCores; cap at 512 rows/step (sweet spot:
    # amortizes ~0.35 us/step overhead, VMEM stays < 8 MB even triple-buffered).
    if b_pad < 16:
        return b_pad
    return min(512, _round_up(b_pad // 2, 8))


def six_layer_classification_forward(x, prepared_params):
    """Eval-mode forward of the 6-layer MLP.

    x: [B, 1000] float32
    prepared_params: output of prepare_params().
    Returns sigmoid(fc6(...)) with shape [B, 8] float32.
    """
    B = x.shape[0]

    # Batch tiling only; features stay at 1000 (full-extent last dim is a
    # legal BlockSpec even though 1000 % 128 != 0).
    B_pad = _round_up(B, 8)
    TB = _choose_tile(B_pad)
    B_pad = _round_up(B_pad, TB)
    if B_pad != B:
        x = jnp.pad(x, ((0, B_pad - B), (0, 0)))

    num_steps = B_pad // TB
    grid = (num_steps,)

    # x / out tiled over batch; weights & biases get a constant index_map so
    # they stay VMEM-resident with no per-step re-DMA. Triple-buffer x when
    # the grid is long enough for it to matter (absorbs DMA jitter on v6e).
    if num_steps >= 3:
        x_spec = pl.BlockSpec((TB, IN_DIM), lambda i: (i, 0),
                              pipeline_mode=pl.Buffered(3))
    else:
        x_spec = pl.BlockSpec((TB, IN_DIM), lambda i: (i, 0))
    out_spec = pl.BlockSpec((TB, OUT_DIM), lambda i: (i, 0))
    const_map = lambda i: (0, 0)

    in_specs = [x_spec]
    flat_args = [x]
    for w, b in prepared_params:
        in_specs.append(pl.BlockSpec(w.shape, const_map))
        in_specs.append(pl.BlockSpec(b.shape, const_map))
        flat_args.extend([w, b])

    out = pl.pallas_call(
        _mlp_kernel,
        out_shape=jax.ShapeDtypeStruct((B_pad, OUT_DIM), jnp.float32),
        grid=grid,
        in_specs=in_specs,
        out_specs=out_spec,
        compiler_params=pltpu.CompilerParams(
            # Parallel batch axis -> split across v7x's 2 TCs (no-op on v5e/v6e).
            dimension_semantics=("parallel",),
            # ~0.85 MB bf16 weights + up-to-3-buffered (TB,1000) f32 x tiles
            # (~6 MB at TB=512) + tiny (TB,8) f32 out << 32 MiB: safe on every
            # generation, including v7x's 64 MiB physical VMEM.
            vmem_limit_bytes=32 * 1024 * 1024,
        ),
    )(*flat_args)

    # Padded batch rows (zeros in, ReLU(b)-derived junk out) are sliced off.
    return out if B_pad == B else out[:B]


def init_params(key):
    """Deterministic parameter init (He-style scaling), shapes match nn.Linear."""
    params = []
    in_dim = IN_DIM
    for out_dim in FC_SIZES:
        key, kw, kb = jax.random.split(key, 3)
        scale = (2.0 / in_dim) ** 0.5
        w = scale * jax.random.normal(kw, (in_dim, out_dim), dtype=jnp.float32)
        b = 0.01 * jax.random.normal(kb, (1, out_dim), dtype=jnp.float32)
        params.append((w, b))
        in_dim = out_dim
    return params


if __name__ == "__main__":
    key = jax.random.PRNGKey(0)
    key, kx = jax.random.split(key)

    B = 2
    x = jax.random.normal(kx, (B, IN_DIM), dtype=jnp.float32)
    params = init_params(key)
    prepared = prepare_params(params)   # one-time weight prep, not per call

    out = jax.block_until_ready(six_layer_classification_forward(x, prepared))
    assert out.shape == (B, OUT_DIM)

    # Reference 1: same bf16-operand / f32-accumulate recipe in pure JAX.
    h = x.astype(jnp.bfloat16)
    ref_bf16 = None
    for i, (w, b) in enumerate(params):
        y = jnp.dot(h, w.astype(jnp.bfloat16),
                    preferred_element_type=jnp.float32) + b
        if i < len(params) - 1:
            h = jnp.maximum(y, 0.0).astype(jnp.bfloat16)
        else:
            ref_bf16 = jax.nn.sigmoid(y)
    assert jnp.allclose(out, ref_bf16, atol=5e-3, rtol=5e-3)

    # Reference 2: full-f32 forward, compared at bf16-level tolerance.
    h32 = x
    for i, (w, b) in enumerate(params):
        h32 = jnp.dot(h32, w) + b
        if i < len(params) - 1:
            h32 = jnp.maximum(h32, 0.0)
    ref32 = jax.nn.sigmoid(h32)
    assert jnp.allclose(out, ref32, atol=2e-2)

    # Exercise a multi-step grid too (B not a multiple of the tile size).
    B2 = 137
    key, kx2 = jax.random.split(key)
    x2 = jax.random.normal(kx2, (B2, IN_DIM), dtype=jnp.float32)
    out2 = jax.block_until_ready(six_layer_classification_forward(x2, prepared))
    h2 = x2
    for i, (w, b) in enumerate(params):
        h2 = jnp.dot(h2, w) + b
        if i < len(params) - 1:
            h2 = jnp.maximum(h2, 0.0)
    ref2 = jax.nn.sigmoid(h2)
    assert out2.shape == (B2, OUT_DIM)
    assert jnp.allclose(out2, ref2, atol=2e-2)

    print("KERNEL_OK")
</pallas_src>

<mosaic_0001>
module attributes {stable_mosaic.version = 11 : i64} {
  func.func @_mlp_kernel(%arg0: i32, %arg1: memref<8x1000xf32, #tpu.memory_space<vmem>>, %arg2: memref<1000x256xbf16, #tpu.memory_space<vmem>>, %arg3: memref<1x256xf32, #tpu.memory_space<vmem>>, %arg4: memref<256x128xbf16, #tpu.memory_space<vmem>>, %arg5: memref<1x128xf32, #tpu.memory_space<vmem>>, %arg6: memref<128x256xbf16, #tpu.memory_space<vmem>>, %arg7: memref<1x256xf32, #tpu.memory_space<vmem>>, %arg8: memref<256x128xbf16, #tpu.memory_space<vmem>>, %arg9: memref<1x128xf32, #tpu.memory_space<vmem>>, %arg10: memref<128x256xbf16, #tpu.memory_space<vmem>>, %arg11: memref<1x256xf32, #tpu.memory_space<vmem>>, %arg12: memref<256x8xbf16, #tpu.memory_space<vmem>>, %arg13: memref<1x8xf32, #tpu.memory_space<vmem>>, %arg14: memref<8x8xf32, #tpu.memory_space<vmem>>) attributes {dimension_semantics = [#tpu.dimension_semantics<parallel>], iteration_bounds = array<i64: 1>, scalar_prefetch = 0 : i64, scratch_operands = 0 : i64, tpu.core_type = #tpu.core_type<tc>, window_params = [{transform_indices = @transform_0, window_bounds = array<i64: 8, 1000>}, {pipeline_mode = #tpu.pipeline_mode<synchronous>, transform_indices = @transform_1, window_bounds = array<i64: 1000, 256>}, {pipeline_mode = #tpu.pipeline_mode<synchronous>, transform_indices = @transform_2, window_bounds = array<i64: 1, 256>}, {pipeline_mode = #tpu.pipeline_mode<synchronous>, transform_indices = @transform_3, window_bounds = array<i64: 256, 128>}, {pipeline_mode = #tpu.pipeline_mode<synchronous>, transform_indices = @transform_4, window_bounds = array<i64: 1, 128>}, {pipeline_mode = #tpu.pipeline_mode<synchronous>, transform_indices = @transform_5, window_bounds = array<i64: 128, 256>}, {pipeline_mode = #tpu.pipeline_mode<synchronous>, transform_indices = @transform_6, window_bounds = array<i64: 1, 256>}, {pipeline_mode = #tpu.pipeline_mode<synchronous>, transform_indices = @transform_7, window_bounds = array<i64: 256, 128>}, {pipeline_mode = #tpu.pipeline_mode<synchronous>, transform_indices = @transform_8, window_bounds = array<i64: 1, 128>}, {pipeline_mode = #tpu.pipeline_mode<synchronous>, transform_indices = @transform_9, window_bounds = array<i64: 128, 256>}, {pipeline_mode = #tpu.pipeline_mode<synchronous>, transform_indices = @transform_10, window_bounds = array<i64: 1, 256>}, {pipeline_mode = #tpu.pipeline_mode<synchronous>, transform_indices = @transform_11, window_bounds = array<i64: 256, 8>}, {pipeline_mode = #tpu.pipeline_mode<synchronous>, transform_indices = @transform_12, window_bounds = array<i64: 1, 8>}, {transform_indices = @transform_13, window_bounds = array<i64: 8, 8>}]} {
    %c0 = arith.constant 0 : index
    %c0_0 = arith.constant 0 : index
    %0 = vector.load %arg1[%c0, %c0_0] : memref<8x1000xf32, #tpu.memory_space<vmem>>, vector<8x1000xf32>
    %1 = arith.truncf %0 : vector<8x1000xf32> to vector<8x1000xbf16>
    %c0_1 = arith.constant 0 : index
    %c0_2 = arith.constant 0 : index
    %2 = vector.load %arg2[%c0_1, %c0_2] : memref<1000x256xbf16, #tpu.memory_space<vmem>>, vector<1000x256xbf16>
    %cst = arith.constant dense<0.000000e+00> : vector<8x256xf32>
    %3 = tpu.matmul %1, %2, %cst {dimension_numbers = #tpu.dot_dimension_numbers<[1], [0], [0], [1], [0, 0, 1, 1], [], []>} : vector<8x1000xbf16>, vector<1000x256xbf16>, vector<8x256xf32> -> vector<8x256xf32>
    %c0_3 = arith.constant 0 : index
    %c0_4 = arith.constant 0 : index
    %4 = vector.load %arg3[%c0_3, %c0_4] : memref<1x256xf32, #tpu.memory_space<vmem>>, vector<1x256xf32>
    %5 = vector.broadcast %4 : vector<1x256xf32> to vector<8x256xf32>
    %6 = arith.addf %3, %5 : vector<8x256xf32>
    %cst_5 = arith.constant 0.000000e+00 : f32
    %7 = vector.broadcast %cst_5 : f32 to vector<8x256xf32>
    %8 = arith.maximumf %6, %7 : vector<8x256xf32>
    %9 = arith.truncf %8 : vector<8x256xf32> to vector<8x256xbf16>
    %c0_6 = arith.constant 0 : index
    %c0_7 = arith.constant 0 : index
    %10 = vector.load %arg4[%c0_6, %c0_7] : memref<256x128xbf16, #tpu.memory_space<vmem>>, vector<256x128xbf16>
    %cst_8 = arith.constant dense<0.000000e+00> : vector<8x128xf32>
    %11 = tpu.matmul %9, %10, %cst_8 {dimension_numbers = #tpu.dot_dimension_numbers<[1], [0], [0], [1], [0, 0, 1, 1], [], []>} : vector<8x256xbf16>, vector<256x128xbf16>, vector<8x128xf32> -> vector<8x128xf32>
    %c0_9 = arith.constant 0 : index
    %c0_10 = arith.constant 0 : index
    %12 = vector.load %arg5[%c0_9, %c0_10] : memref<1x128xf32, #tpu.memory_space<vmem>>, vector<1x128xf32>
    %13 = vector.broadcast %12 : vector<1x128xf32> to vector<8x128xf32>
    %14 = arith.addf %11, %13 : vector<8x128xf32>
    %cst_11 = arith.constant 0.000000e+00 : f32
    %15 = vector.broadcast %cst_11 : f32 to vector<8x128xf32>
    %16 = arith.maximumf %14, %15 : vector<8x128xf32>
    %17 = arith.truncf %16 : vector<8x128xf32> to vector<8x128xbf16>
    %c0_12 = arith.constant 0 : index
    %c0_13 = arith.constant 0 : index
    %18 = vector.load %arg6[%c0_12, %c0_13] : memref<128x256xbf16, #tpu.memory_space<vmem>>, vector<128x256xbf16>
    %cst_14 = arith.constant dense<0.000000e+00> : vector<8x256xf32>
    %19 = tpu.matmul %17, %18, %cst_14 {dimension_numbers = #tpu.dot_dimension_numbers<[1], [0], [0], [1], [0, 0, 1, 1], [], []>} : vector<8x128xbf16>, vector<128x256xbf16>, vector<8x256xf32> -> vector<8x256xf32>
    %c0_15 = arith.constant 0 : index
    %c0_16 = arith.constant 0 : index
    %20 = vector.load %arg7[%c0_15, %c0_16] : memref<1x256xf32, #tpu.memory_space<vmem>>, vector<1x256xf32>
    %21 = vector.broadcast %20 : vector<1x256xf32> to vector<8x256xf32>
    %22 = arith.addf %19, %21 : vector<8x256xf32>
    %cst_17 = arith.constant 0.000000e+00 : f32
    %23 = vector.broadcast %cst_17 : f32 to vector<8x256xf32>
    %24 = arith.maximumf %22, %23 : vector<8x256xf32>
    %25 = arith.truncf %24 : vector<8x256xf32> to vector<8x256xbf16>
    %c0_18 = arith.constant 0 : index
    %c0_19 = arith.constant 0 : index
    %26 = vector.load %arg8[%c0_18, %c0_19] : memref<256x128xbf16, #tpu.memory_space<vmem>>, vector<256x128xbf16>
    %cst_20 = arith.constant dense<0.000000e+00> : vector<8x128xf32>
    %27 = tpu.matmul %25, %26, %cst_20 {dimension_numbers = #tpu.dot_dimension_numbers<[1], [0], [0], [1], [0, 0, 1, 1], [], []>} : vector<8x256xbf16>, vector<256x128xbf16>, vector<8x128xf32> -> vector<8x128xf32>
    %c0_21 = arith.constant 0 : index
    %c0_22 = arith.constant 0 : index
    %28 = vector.load %arg9[%c0_21, %c0_22] : memref<1x128xf32, #tpu.memory_space<vmem>>, vector<1x128xf32>
    %29 = vector.broadcast %28 : vector<1x128xf32> to vector<8x128xf32>
    %30 = arith.addf %27, %29 : vector<8x128xf32>
    %cst_23 = arith.constant 0.000000e+00 : f32
    %31 = vector.broadcast %cst_23 : f32 to vector<8x128xf32>
    %32 = arith.maximumf %30, %31 : vector<8x128xf32>
    %33 = arith.truncf %32 : vector<8x128xf32> to vector<8x128xbf16>
    %c0_24 = arith.constant 0 : index
    %c0_25 = arith.constant 0 : index
    %34 = vector.load %arg10[%c0_24, %c0_25] : memref<128x256xbf16, #tpu.memory_space<vmem>>, vector<128x256xbf16>
    %cst_26 = arith.constant dense<0.000000e+00> : vector<8x256xf32>
    %35 = tpu.matmul %33, %34, %cst_26 {dimension_numbers = #tpu.dot_dimension_numbers<[1], [0], [0], [1], [0, 0, 1, 1], [], []>} : vector<8x128xbf16>, vector<128x256xbf16>, vector<8x256xf32> -> vector<8x256xf32>
    %c0_27 = arith.constant 0 : index
    %c0_28 = arith.constant 0 : index
    %36 = vector.load %arg11[%c0_27, %c0_28] : memref<1x256xf32, #tpu.memory_space<vmem>>, vector<1x256xf32>
    %37 = vector.broadcast %36 : vector<1x256xf32> to vector<8x256xf32>
    %38 = arith.addf %35, %37 : vector<8x256xf32>
    %cst_29 = arith.constant 0.000000e+00 : f32
    %39 = vector.broadcast %cst_29 : f32 to vector<8x256xf32>
    %40 = arith.maximumf %38, %39 : vector<8x256xf32>
    %41 = arith.truncf %40 : vector<8x256xf32> to vector<8x256xbf16>
    %c0_30 = arith.constant 0 : index
    %c0_31 = arith.constant 0 : index
    %42 = vector.load %arg12[%c0_30, %c0_31] : memref<256x8xbf16, #tpu.memory_space<vmem>>, vector<256x8xbf16>
    %cst_32 = arith.constant dense<0.000000e+00> : vector<8x8xf32>
    %43 = tpu.matmul %41, %42, %cst_32 {dimension_numbers = #tpu.dot_dimension_numbers<[1], [0], [0], [1], [0, 0, 1, 1], [], []>} : vector<8x256xbf16>, vector<256x8xbf16>, vector<8x8xf32> -> vector<8x8xf32>
    %c0_33 = arith.constant 0 : index
    %c0_34 = arith.constant 0 : index
    %44 = vector.load %arg13[%c0_33, %c0_34] : memref<1x8xf32, #tpu.memory_space<vmem>>, vector<1x8xf32>
    %45 = vector.broadcast %44 : vector<1x8xf32> to vector<8x8xf32>
    %46 = arith.addf %43, %45 : vector<8x8xf32>
    %47 = arith.negf %46 : vector<8x8xf32>
    %48 = math.exp %47 : vector<8x8xf32>
    %cst_35 = arith.constant 1.000000e+00 : f32
    %49 = vector.broadcast %cst_35 : f32 to vector<8x8xf32>
    %50 = arith.addf %49, %48 : vector<8x8xf32>
    %51 = arith.divf %49, %50 : vector<8x8xf32>
    %c0_36 = arith.constant 0 : index
    %c0_37 = arith.constant 0 : index
    %52 = vector.load %arg14[%c0_36, %c0_37] : memref<8x8xf32, #tpu.memory_space<vmem>>, vector<8x8xf32>
    tpu.vector_store %arg14[%c0_36, %c0_37], %51 {strides = array<i32>} : memref<8x8xf32, #tpu.memory_space<vmem>>, vector<8x8xf32>,
    return
  }
  func.func @transform_0(%arg0: i32) -> (i32, i32) {
    %c0_i32 = arith.constant 0 : i32
    %c0_i32_0 = arith.constant 0 : i32
    return %arg0, %c0_i32 : i32, i32
  }
  func.func @transform_1(%arg0: i32) -> (i32, i32) {
    %c0_i32 = arith.constant 0 : i32
    %c0_i32_0 = arith.constant 0 : i32
    %c0_i32_1 = arith.constant 0 : i32
    return %c0_i32, %c0_i32_0 : i32, i32
  }
  func.func @transform_2(%arg0: i32) -> (i32, i32) {
    %c0_i32 = arith.constant 0 : i32
    %c0_i32_0 = arith.constant 0 : i32
    %c0_i32_1 = arith.constant 0 : i32
    return %c0_i32, %c0_i32_0 : i32, i32
  }
  func.func @transform_3(%arg0: i32) -> (i32, i32) {
    %c0_i32 = arith.constant 0 : i32
    %c0_i32_0 = arith.constant 0 : i32
    %c0_i32_1 = arith.constant 0 : i32
    return %c0_i32, %c0_i32_0 : i32, i32
  }
  func.func @transform_4(%arg0: i32) -> (i32, i32) {
    %c0_i32 = arith.constant 0 : i32
    %c0_i32_0 = arith.constant 0 : i32
    %c0_i32_1 = arith.constant 0 : i32
    return %c0_i32, %c0_i32_0 : i32, i32
  }
  func.func @transform_5(%arg0: i32) -> (i32, i32) {
    %c0_i32 = arith.constant 0 : i32
    %c0_i32_0 = arith.constant 0 : i32
    %c0_i32_1 = arith.constant 0 : i32
    return %c0_i32, %c0_i32_0 : i32, i32
  }
  func.func @transform_6(%arg0: i32) -> (i32, i32) {
    %c0_i32 = arith.constant 0 : i32
    %c0_i32_0 = arith.constant 0 : i32
    %c0_i32_1 = arith.constant 0 : i32
    return %c0_i32, %c0_i32_0 : i32, i32
  }
  func.func @transform_7(%arg0: i32) -> (i32, i32) {
    %c0_i32 = arith.constant 0 : i32
    %c0_i32_0 = arith.constant 0 : i32
    %c0_i32_1 = arith.constant 0 : i32
    return %c0_i32, %c0_i32_0 : i32, i32
  }
  func.func @transform_8(%arg0: i32) -> (i32, i32) {
    %c0_i32 = arith.constant 0 : i32
    %c0_i32_0 = arith.constant 0 : i32
    %c0_i32_1 = arith.constant 0 : i32
    return %c0_i32, %c0_i32_0 : i32, i32
  }
  func.func @transform_9(%arg0: i32) -> (i32, i32) {
    %c0_i32 = arith.constant 0 : i32
    %c0_i32_0 = arith.constant 0 : i32
    %c0_i32_1 = arith.constant 0 : i32
    return %c0_i32, %c0_i32_0 : i32, i32
  }
  func.func @transform_10(%arg0: i32) -> (i32, i32) {
    %c0_i32 = arith.constant 0 : i32
    %c0_i32_0 = arith.constant 0 : i32
    %c0_i32_1 = arith.constant 0 : i32
    return %c0_i32, %c0_i32_0 : i32, i32
  }
  func.func @transform_11(%arg0: i32) -> (i32, i32) {
    %c0_i32 = arith.constant 0 : i32
    %c0_i32_0 = arith.constant 0 : i32
    %c0_i32_1 = arith.constant 0 : i32
    return %c0_i32, %c0_i32_0 : i32, i32
  }
  func.func @transform_12(%arg0: i32) -> (i32, i32) {
    %c0_i32 = arith.constant 0 : i32
    %c0_i32_0 = arith.constant 0 : i32
    %c0_i32_1 = arith.constant 0 : i32
    return %c0_i32, %c0_i32_0 : i32, i32
  }
  func.func @transform_13(%arg0: i32) -> (i32, i32) {
    %c0_i32 = arith.constant 0 : i32
    %c0_i32_0 = arith.constant 0 : i32
    return %arg0, %c0_i32 : i32, i32
  }
}

</mosaic_0001>

<llo_original>
// kernel: tpu_custom_call.1
$region0: #{tpu_custom_call.1}
  #allocation0 [shape = 'u32[]', space=smem, size = 0x4, offset = 0x4, fixed_abs, tag = 'smem constant byte address 0x4 - core index']
  #allocation1 [shape = 'u32[144,128]{1,0:T(1,128)}', space=vmem, size = 0x12000, scoped, tag = 'internal scratch']
  %s0 = inlined_call_operand.hbm [shape: f32[8,1000], index: 0, kind: input, shape index: {}]
  %s1 = inlined_call_operand.hbm [shape: bf16[1000,256], index: 1, kind: input, shape index: {}]
  %s2 = inlined_call_operand.vmem [shape: f32[1,256], index: 2, kind: input, shape index: {}]
  %s3 = inlined_call_operand.vmem [shape: bf16[256,128], index: 3, kind: input, shape index: {}]
  %s4 = inlined_call_operand.vmem [shape: f32[1,128], index: 4, kind: input, shape index: {}]
  %s5 = inlined_call_operand.hbm [shape: bf16[128,256], index: 5, kind: input, shape index: {}]
  %s6 = inlined_call_operand.vmem [shape: f32[1,256], index: 6, kind: input, shape index: {}]
  %s7 = inlined_call_operand.hbm [shape: bf16[256,128], index: 7, kind: input, shape index: {}]
  %s8 = inlined_call_operand.vmem [shape: f32[1,128], index: 8, kind: input, shape index: {}]
  %s9 = inlined_call_operand.hbm [shape: bf16[128,256], index: 9, kind: input, shape index: {}]
  %s10 = inlined_call_operand.vmem [shape: f32[1,256], index: 10, kind: input, shape index: {}]
  %s11 = inlined_call_operand.vmem [shape: bf16[256,8], index: 11, kind: input, shape index: {}]
  %s12 = inlined_call_operand.vmem [shape: f32[1,8], index: 12, kind: input, shape index: {}]
  %s13 = inlined_call_operand.hbm [shape: f32[8,8], index: 13, kind: output, shape index: {}]
  %s14 = sld [smem:[#allocation0]]
  $region82: #{tpu_custom_call.1} parent=0
    _
  %s16 = ssub.s32 1, %s14
  %s17 = scalar_select 0, %s16, %s14
  $region1: #{tpu_custom_call.1} parent=0
    #allocation2 [shape = 'u8[32768]{0}', space=vmem, size = 0x8000, scoped, tag = 'input window, operand 0, single buffered']
    #allocation3 [shape = 's32[1]{0}', space=sflag, size = 0x4, scoped, tag = 'scoped memory for tpu_custom_call.1']
    #allocation4 [shape = 's32[1]{0}', space=sflag, size = 0x4, scoped, tag = 'scoped memory for tpu_custom_call.1']
    #allocation5 [shape = 'u8[512000]{0}', space=vmem, size = 0x7d000, scoped, tag = 'input window, operand 1, single buffered']
    #allocation6 [shape = 's32[1]{0}', space=sflag, size = 0x4, scoped, tag = 'scoped memory for tpu_custom_call.1']
    #allocation7 [shape = 'u8[65536]{0}', space=vmem, size = 0x10000, scoped, tag = 'input window, operand 5, single buffered']
    #allocation8 [shape = 'u8[65536]{0}', space=vmem, size = 0x10000, scoped, tag = 'input window, operand 7, single buffered']
    #allocation9 [shape = 's32[1]{0}', space=sflag, size = 0x4, scoped, tag = 'scoped memory for tpu_custom_call.1']
    #allocation10 [shape = 'u8[65536]{0}', space=vmem, size = 0x10000, scoped, tag = 'input window, operand 9, single buffered']
    #allocation11 [shape = 'u8[4096]{0}', space=vmem, size = 0x1000, scoped, tag = 'output window, operand 0, single buffered']
    %18 = vsyncpa [#allocation3], 0
    %19 = vsyncpa [#allocation6], 0
    %20 = vsyncpa [#allocation9], 0
    %21 = vsyncpa [#allocation4], 0
    // Predicated region
    $region2: #{tpu_custom_call.1} parent=1 // pred_check
      _
    $region3: #{tpu_custom_call.1} parent=1 // pred_check_branch
      %23 = sbr.rel (0) target = $region5
    $region4: #{tpu_custom_call.1} parent=1 // pred_region
      %s25 = ssub.s32 1024, 1024
      %26 = vsyncadd [#allocation3], %s25
      %s28 = sshll.u32 [#allocation2], 4
      %s29 = int_to_ptr.vmem [resolvable:$true] %s28
      %31 = dma.hbm_to_vmem [thread:$0]  %s0, 1024, %s29, [#allocation3]
    $region5: #{tpu_custom_call.1} parent=1 // pred_fallthru
      _
    // Predicated region
    $region6: #{tpu_custom_call.1} parent=1 // pred_check
      _
    $region7: #{tpu_custom_call.1} parent=1 // pred_check_branch
      %33 = sbr.rel (0) target = $region9
    $region8: #{tpu_custom_call.1} parent=1 // pred_region
      %s35 = ssub.s32 16000, 16000
      %36 = vsyncadd [#allocation6], %s35
      %s37 = sshll.u32 [#allocation5], 4
      %s38 = int_to_ptr.vmem [resolvable:$true] %s37
      %43 = dma.hbm_to_vmem [thread:$0]  %s1, 16000, %s38, [#allocation6], 128, 128, 8
    $region9: #{tpu_custom_call.1} parent=1 // pred_fallthru
      _
    // Predicated region
    $region10: #{tpu_custom_call.1} parent=1 // pred_check
      _
    $region11: #{tpu_custom_call.1} parent=1 // pred_check_branch
      %45 = sbr.rel (0) target = $region13
    $region12: #{tpu_custom_call.1} parent=1 // pred_region
      _
    $region13: #{tpu_custom_call.1} parent=1 // pred_fallthru
      _
    // Predicated region
    $region14: #{tpu_custom_call.1} parent=1 // pred_check
      _
    $region15: #{tpu_custom_call.1} parent=1 // pred_check_branch
      %47 = sbr.rel (0) target = $region17
    $region16: #{tpu_custom_call.1} parent=1 // pred_region
      _
    $region17: #{tpu_custom_call.1} parent=1 // pred_fallthru
      _
    // Predicated region
    $region18: #{tpu_custom_call.1} parent=1 // pred_check
      _
    $region19: #{tpu_custom_call.1} parent=1 // pred_check_branch
      %49 = sbr.rel (0) target = $region21
    $region20: #{tpu_custom_call.1} parent=1 // pred_region
      _
    $region21: #{tpu_custom_call.1} parent=1 // pred_fallthru
      _
    // Predicated region
    $region22: #{tpu_custom_call.1} parent=1 // pred_check
      _
    $region23: #{tpu_custom_call.1} parent=1 // pred_check_branch
      %51 = sbr.rel (0) target = $region25
    $region24: #{tpu_custom_call.1} parent=1 // pred_region
      %s53 = ssub.s32 2048, 2048
      %54 = vsyncadd [#allocation6], %s53
      %s55 = sshll.u32 [#allocation7], 4
      %s56 = int_to_ptr.vmem [resolvable:$true] %s55
      %61 = dma.hbm_to_vmem [thread:$0]  %s5, 2048, %s56, [#allocation6], 128, 128, 8
    $region25: #{tpu_custom_call.1} parent=1 // pred_fallthru
      _
    // Predicated region
    $region26: #{tpu_custom_call.1} parent=1 // pred_check
      _
    $region27: #{tpu_custom_call.1} parent=1 // pred_check_branch
      %63 = sbr.rel (0) target = $region29
    $region28: #{tpu_custom_call.1} parent=1 // pred_region
      _
    $region29: #{tpu_custom_call.1} parent=1 // pred_fallthru
      _
    // Predicated region
    $region30: #{tpu_custom_call.1} parent=1 // pred_check
      _
    $region31: #{tpu_custom_call.1} parent=1 // pred_check_branch
      %65 = sbr.rel (0) target = $region33
    $region32: #{tpu_custom_call.1} parent=1 // pred_region
      %s67 = ssub.s32 2048, 2048
      %68 = vsyncadd [#allocation9], %s67
      %s69 = sshll.u32 [#allocation8], 4
      %s70 = int_to_ptr.vmem [resolvable:$true] %s69
      %75 = dma.hbm_to_vmem [thread:$0]  %s7, 2048, %s70, [#allocation9], 64, 64, 4
    $region33: #{tpu_custom_call.1} parent=1 // pred_fallthru
      _
    // Predicated region
    $region34: #{tpu_custom_call.1} parent=1 // pred_check
      _
    $region35: #{tpu_custom_call.1} parent=1 // pred_check_branch
      %77 = sbr.rel (0) target = $region37
    $region36: #{tpu_custom_call.1} parent=1 // pred_region
      _
    $region37: #{tpu_custom_call.1} parent=1 // pred_fallthru
      _
    // Predicated region
    $region38: #{tpu_custom_call.1} parent=1 // pred_check
      _
    $region39: #{tpu_custom_call.1} parent=1 // pred_check_branch
      %79 = sbr.rel (0) target = $region41
    $region40: #{tpu_custom_call.1} parent=1 // pred_region
      %s81 = ssub.s32 2048, 2048
      %82 = vsyncadd [#allocation9], %s81
      %s83 = sshll.u32 [#allocation10], 4
      %s84 = int_to_ptr.vmem [resolvable:$true] %s83
      %89 = dma.hbm_to_vmem [thread:$0]  %s9, 2048, %s84, [#allocation9], 128, 128, 8
    $region41: #{tpu_custom_call.1} parent=1 // pred_fallthru
      _
    // Predicated region
    $region42: #{tpu_custom_call.1} parent=1 // pred_check
      _
    $region43: #{tpu_custom_call.1} parent=1 // pred_check_branch
      %91 = sbr.rel (0) target = $region45
    $region44: #{tpu_custom_call.1} parent=1 // pred_region
      _
    $region45: #{tpu_custom_call.1} parent=1 // pred_fallthru
      _
    // Predicated region
    $region46: #{tpu_custom_call.1} parent=1 // pred_check
      _
    $region47: #{tpu_custom_call.1} parent=1 // pred_check_branch
      %93 = sbr.rel (0) target = $region49
    $region48: #{tpu_custom_call.1} parent=1 // pred_region
      _
    $region49: #{tpu_custom_call.1} parent=1 // pred_fallthru
      _
    // Predicated region
    $region50: #{tpu_custom_call.1} parent=1 // pred_check
      _
    $region51: #{tpu_custom_call.1} parent=1 // pred_check_branch
      %95 = sbr.rel (0) target = $region53
    $region52: #{tpu_custom_call.1} parent=1 // pred_region
      _
    $region53: #{tpu_custom_call.1} parent=1 // pred_fallthru
      _
    // Predicated region
    $region54: #{tpu_custom_call.1} parent=1 // pred_check
      _
    $region55: #{tpu_custom_call.1} parent=1 // pred_check_branch
      %97 = sbr.rel (0) target = $region57
    $region56: #{tpu_custom_call.1} parent=1 // pred_region
      %98 = dma.done [#allocation3], 1024
    $region57: #{tpu_custom_call.1} parent=1 // pred_fallthru
      _
    // Predicated region
    $region58: #{tpu_custom_call.1} parent=1 // pred_check
      _
    $region59: #{tpu_custom_call.1} parent=1 // pred_check_branch
      %100 = sbr.rel (0) target = $region61
    $region60: #{tpu_custom_call.1} parent=1 // pred_region
      %101 = dma.done [#allocation6], 16000
    $region61: #{tpu_custom_call.1} parent=1 // pred_fallthru
      _
    // Predicated region
    $region62: #{tpu_custom_call.1} parent=1 // pred_check
      _
    $region63: #{tpu_custom_call.1} parent=1 // pred_check_branch
      %103 = sbr.rel (0) target = $region65
    $region64: #{tpu_custom_call.1} parent=1 // pred_region
      %104 = dma.done [#allocation6], 2048
    $region65: #{tpu_custom_call.1} parent=1 // pred_fallthru
      _
    // Predicated region
    $region66: #{tpu_custom_call.1} parent=1 // pred_check
      _
    $region67: #{tpu_custom_call.1} parent=1 // pred_check_branch
      %106 = sbr.rel (0) target = $region69
    $region68: #{tpu_custom_call.1} parent=1 // pred_region
      %107 = dma.done [#allocation9], 2048
    $region69: #{tpu_custom_call.1} parent=1 // pred_fallthru
      _
    // Predicated region
    $region70: #{tpu_custom_call.1} parent=1 // pred_check
      _
    $region71: #{tpu_custom_call.1} parent=1 // pred_check_branch
      %109 = sbr.rel (0) target = $region73
    $region72: #{tpu_custom_call.1} parent=1 // pred_region
      %110 = dma.done [#allocation9], 2048
    $region73: #{tpu_custom_call.1} parent=1 // pred_fallthru
      _
    %v112 = vld [vmem:[#allocation2] sm:$0xff]
    %v113 = vld [vmem:[#allocation2 + $0x8] sm:$0xff]
    %v114 = vld [vmem:[#allocation2 + $0x10] sm:$0xff]
    %v115 = vld [vmem:[#allocation2 + $0x18] sm:$0xff]
    %v116 = vld [vmem:[#allocation2 + $0x20] sm:$0xff]
    %v117 = vld [vmem:[#allocation2 + $0x28] sm:$0xff]
    %v118 = vld [vmem:[#allocation2 + $0x30] sm:$0xff]
    %v119 = vld [vmem:[#allocation2 + $0x38] sm:$0xff]
    %v120 = vpack.c.bf16 %v112, %v112
    %v121 = vpack.c.bf16 %v113, %v113
    %v122 = vpack.c.bf16 %v114, %v114
    %v123 = vpack.c.bf16 %v115, %v115
    %v124 = vpack.c.bf16 %v116, %v116
    %v125 = vpack.c.bf16 %v117, %v117
    %v126 = vpack.c.bf16 %v118, %v118
    %v127 = vpack.c.bf16 %v119, %v119
    %v128 = vld [vmem:[#allocation5] sm:$0xff]
    %v129 = vld [vmem:[#allocation5 + $0x8] sm:$0xff]
    %v130 = vld [vmem:[#allocation5 + $0x10] sm:$0xff]
    %v131 = vld [vmem:[#allocation5 + $0x18] sm:$0xff]
    %v132 = vld [vmem:[#allocation5 + $0x20] sm:$0xff]
    %v133 = vld [vmem:[#allocation5 + $0x28] sm:$0xff]
    %v134 = vld [vmem:[#allocation5 + $0x30] sm:$0xff]
    %v135 = vld [vmem:[#allocation5 + $0x38] sm:$0xff]
    %v136 = vld [vmem:[#allocation5 + $0x40] sm:$0xff]
    %v137 = vld [vmem:[#allocation5 + $0x48] sm:$0xff]
    %v138 = vld [vmem:[#allocation5 + $0x50] sm:$0xff]
    %v139 = vld [vmem:[#allocation5 + $0x58] sm:$0xff]
    %v140 = vld [vmem:[#allocation5 + $0x60] sm:$0xff]
    %v141 = vld [vmem:[#allocation5 + $0x68] sm:$0xff]
    %v142 = vld [vmem:[#allocation5 + $0x70] sm:$0xff]
    %v143 = vld [vmem:[#allocation5 + $0x78] sm:$0xff]
    %v144 = vld [vmem:[#allocation5 + $0x80] sm:$0xff]
    %v145 = vld [vmem:[#allocation5 + $0x88] sm:$0xff]
    %v146 = vld [vmem:[#allocation5 + $0x90] sm:$0xff]
    %v147 = vld [vmem:[#allocation5 + $0x98] sm:$0xff]
    %v148 = vld [vmem:[#allocation5 + $0xa0] sm:$0xff]
    %v149 = vld [vmem:[#allocation5 + $0xa8] sm:$0xff]
    %v150 = vld [vmem:[#allocation5 + $0xb0] sm:$0xff]
    %v151 = vld [vmem:[#allocation5 + $0xb8] sm:$0xff]
    %v152 = vld [vmem:[#allocation5 + $0xc0] sm:$0xff]
    %v153 = vld [vmem:[#allocation5 + $0xc8] sm:$0xff]
    %v154 = vld [vmem:[#allocation5 + $0xd0] sm:$0xff]
    %v155 = vld [vmem:[#allocation5 + $0xd8] sm:$0xff]
    %v156 = vld [vmem:[#allocation5 + $0xe0] sm:$0xff]
    %v157 = vld [vmem:[#allocation5 + $0xe8] sm:$0xff]
    %v158 = vld [vmem:[#allocation5 + $0xf0] sm:$0xff]
    %v159 = vld [vmem:[#allocation5 + $0xf8] sm:$0xff]
    %v160 = vld [vmem:[#allocation5 + $0x100] sm:$0xff]
    %v161 = vld [vmem:[#allocation5 + $0x108] sm:$0xff]
    %v162 = vld [vmem:[#allocation5 + $0x110] sm:$0xff]
    %v163 = vld [vmem:[#allocation5 + $0x118] sm:$0xff]
    %v164 = vld [vmem:[#allocation5 + $0x120] sm:$0xff]
    %v165 = vld [vmem:[#allocation5 + $0x128] sm:$0xff]
    %v166 = vld [vmem:[#allocation5 + $0x130] sm:$0xff]
    %v167 = vld [vmem:[#allocation5 + $0x138] sm:$0xff]
    %v168 = vld [vmem:[#allocation5 + $0x140] sm:$0xff]
    %v169 = vld [vmem:[#allocation5 + $0x148] sm:$0xff]
    %v170 = vld [vmem:[#allocation5 + $0x150] sm:$0xff]
    %v171 = vld [vmem:[#allocation5 + $0x158] sm:$0xff]
    %v172 = vld [vmem:[#allocation5 + $0x160] sm:$0xff]
    %v173 = vld [vmem:[#allocation5 + $0x168] sm:$0xff]
    %v174 = vld [vmem:[#allocation5 + $0x170] sm:$0xff]
    %v175 = vld [vmem:[#allocation5 + $0x178] sm:$0xff]
    %v176 = vld [vmem:[#allocation5 + $0x180] sm:$0xff]
    %v177 = vld [vmem:[#allocation5 + $0x188] sm:$0xff]
    %v178 = vld [vmem:[#allocation5 + $0x190] sm:$0xff]
    %v179 = vld [vmem:[#allocation5 + $0x198] sm:$0xff]
    %v180 = vld [vmem:[#allocation5 + $0x1a0] sm:$0xff]
    %v181 = vld [vmem:[#allocation5 + $0x1a8] sm:$0xff]
    %v182 = vld [vmem:[#allocation5 + $0x1b0] sm:$0xff]
    %v183 = vld [vmem:[#allocation5 + $0x1b8] sm:$0xff]
    %v184 = vld [vmem:[#allocation5 + $0x1c0] sm:$0xff]
    %v185 = vld [vmem:[#allocation5 + $0x1c8] sm:$0xff]
    %v186 = vld [vmem:[#allocation5 + $0x1d0] sm:$0xff]
    %v187 = vld [vmem:[#allocation5 + $0x1d8] sm:$0xff]
    %v188 = vld [vmem:[#allocation5 + $0x1e0] sm:$0xff]
    %v189 = vld [vmem:[#allocation5 + $0x1e8] sm:$0xff]
    %v190 = vld [vmem:[#allocation5 + $0x1f0] sm:$0xff]
    %v191 = vld [vmem:[#allocation5 + $0x1f8] sm:$0xff]
    %v192 = vld [vmem:[#allocation5 + $0x200] sm:$0xff]
    %v193 = vld [vmem:[#allocation5 + $0x208] sm:$0xff]
    %v194 = vld [vmem:[#allocation5 + $0x210] sm:$0xff]
    %v195 = vld [vmem:[#allocation5 + $0x218] sm:$0xff]
    %v196 = vld [vmem:[#allocation5 + $0x220] sm:$0xff]
    %v197 = vld [vmem:[#allocation5 + $0x228] sm:$0xff]
    %v198 = vld [vmem:[#allocation5 + $0x230] sm:$0xff]
    %v199 = vld [vmem:[#allocation5 + $0x238] sm:$0xff]
    %v200 = vld [vmem:[#allocation5 + $0x240] sm:$0xff]
    %v201 = vld [vmem:[#allocation5 + $0x248] sm:$0xff]
    %v202 = vld [vmem:[#allocation5 + $0x250] sm:$0xff]
    %v203 = vld [vmem:[#allocation5 + $0x258] sm:$0xff]
    %v204 = vld [vmem:[#allocation5 + $0x260] sm:$0xff]
    %v205 = vld [vmem:[#allocation5 + $0x268] sm:$0xff]
    %v206 = vld [vmem:[#allocation5 + $0x270] sm:$0xff]
    %v207 = vld [vmem:[#allocation5 + $0x278] sm:$0xff]
    %v208 = vld [vmem:[#allocation5 + $0x280] sm:$0xff]
    %v209 = vld [vmem:[#allocation5 + $0x288] sm:$0xff]
    %v210 = vld [vmem:[#allocation5 + $0x290] sm:$0xff]
    %v211 = vld [vmem:[#allocation5 + $0x298] sm:$0xff]
    %v212 = vld [vmem:[#allocation5 + $0x2a0] sm:$0xff]
    %v213 = vld [vmem:[#allocation5 + $0x2a8] sm:$0xff]
    %v214 = vld [vmem:[#allocation5 + $0x2b0] sm:$0xff]
    %v215 = vld [vmem:[#allocation5 + $0x2b8] sm:$0xff]
    %v216 = vld [vmem:[#allocation5 + $0x2c0] sm:$0xff]
    %v217 = vld [vmem:[#allocation5 + $0x2c8] sm:$0xff]
    %v218 = vld [vmem:[#allocation5 + $0x2d0] sm:$0xff]
    %v219 = vld [vmem:[#allocation5 + $0x2d8] sm:$0xff]
    %v220 = vld [vmem:[#allocation5 + $0x2e0] sm:$0xff]
    %v221 = vld [vmem:[#allocation5 + $0x2e8] sm:$0xff]
    %v222 = vld [vmem:[#allocation5 + $0x2f0] sm:$0xff]
    %v223 = vld [vmem:[#allocation5 + $0x2f8] sm:$0xff]
    %v224 = vld [vmem:[#allocation5 + $0x300] sm:$0xff]
    %v225 = vld [vmem:[#allocation5 + $0x308] sm:$0xff]
    %v226 = vld [vmem:[#allocation5 + $0x310] sm:$0xff]
    %v227 = vld [vmem:[#allocation5 + $0x318] sm:$0xff]
    %v228 = vld [vmem:[#allocation5 + $0x320] sm:$0xff]
    %v229 = vld [vmem:[#allocation5 + $0x328] sm:$0xff]
    %v230 = vld [vmem:[#allocation5 + $0x330] sm:$0xff]
    %v231 = vld [vmem:[#allocation5 + $0x338] sm:$0xff]
    %v232 = vld [vmem:[#allocation5 + $0x340] sm:$0xff]
    %v233 = vld [vmem:[#allocation5 + $0x348] sm:$0xff]
    %v234 = vld [vmem:[#allocation5 + $0x350] sm:$0xff]
    %v235 = vld [vmem:[#allocation5 + $0x358] sm:$0xff]
    %v236 = vld [vmem:[#allocation5 + $0x360] sm:$0xff]
    %v237 = vld [vmem:[#allocation5 + $0x368] sm:$0xff]
    %v238 = vld [vmem:[#allocation5 + $0x370] sm:$0xff]
    %v239 = vld [vmem:[#allocation5 + $0x378] sm:$0xff]
    %v240 = vld [vmem:[#allocation5 + $0x380] sm:$0xff]
    %v241 = vld [vmem:[#allocation5 + $0x388] sm:$0xff]
    %v242 = vld [vmem:[#allocation5 + $0x390] sm:$0xff]
    %v243 = vld [vmem:[#allocation5 + $0x398] sm:$0xff]
    %v244 = vld [vmem:[#allocation5 + $0x3a0] sm:$0xff]
    %v245 = vld [vmem:[#allocation5 + $0x3a8] sm:$0xff]
    %v246 = vld [vmem:[#allocation5 + $0x3b0] sm:$0xff]
    %v247 = vld [vmem:[#allocation5 + $0x3b8] sm:$0xff]
    %v248 = vld [vmem:[#allocation5 + $0x3c0] sm:$0xff]
    %v249 = vld [vmem:[#allocation5 + $0x3c8] sm:$0xff]
    %v250 = vld [vmem:[#allocation5 + $0x3d0] sm:$0xff]
    %v251 = vld [vmem:[#allocation5 + $0x3d8] sm:$0xff]
    %v252 = vld [vmem:[#allocation5 + $0x3e0] sm:$0xff]
    %v253 = vld [vmem:[%s2] sm:$0x3]
    %v255 = vlaneseq
    %v256 = vshrl.u32 %v255, 7
    %v257 = vsub.s32 0, %v256
    %v258 = vrot.slane %v253, %v257
    %v259 = vlaneseq
    %v260 = vshrl.u32 %v259, 7
    %v261 = vsub.s32 1, %v260
    %v262 = vrot.slane %v253, %v261
    %v390 = vunpack.c.l.b16 %v128
    %v391 = vunpack.c.h.b16 %v128
    %v392 = vunpack.c.l.b16 %v129
    %v393 = vunpack.c.h.b16 %v129
    %v394 = vunpack.c.l.b16 %v130
    %v395 = vunpack.c.h.b16 %v130
    %v396 = vunpack.c.l.b16 %v131
    %v397 = vunpack.c.h.b16 %v131
    %v398 = vunpack.c.l.b16 %v132
    %v399 = vunpack.c.h.b16 %v132
    %v400 = vunpack.c.l.b16 %v133
    %v401 = vunpack.c.h.b16 %v133
    %v402 = vunpack.c.l.b16 %v134
    %v403 = vunpack.c.h.b16 %v134
    %v404 = vunpack.c.l.b16 %v135
    %v405 = vunpack.c.h.b16 %v135
    %v406 = vunpack.c.l.b16 %v136
    %v407 = vunpack.c.h.b16 %v136
    %v408 = vunpack.c.l.b16 %v137
    %v409 = vunpack.c.h.b16 %v137
    %v410 = vunpack.c.l.b16 %v138
    %v411 = vunpack.c.h.b16 %v138
    %v412 = vunpack.c.l.b16 %v139
    %v413 = vunpack.c.h.b16 %v139
    %v414 = vunpack.c.l.b16 %v140
    %v415 = vunpack.c.h.b16 %v140
    %v416 = vunpack.c.l.b16 %v141
    %v417 = vunpack.c.h.b16 %v141
    %v418 = vunpack.c.l.b16 %v142
    %v419 = vunpack.c.h.b16 %v142
    %v420 = vunpack.c.l.b16 %v143
    %v421 = vunpack.c.h.b16 %v143
    %v422 = vunpack.c.l.b16 %v144
    %v423 = vunpack.c.h.b16 %v144
    %v424 = vunpack.c.l.b16 %v145
    %v425 = vunpack.c.h.b16 %v145
    %v426 = vunpack.c.l.b16 %v146
    %v427 = vunpack.c.h.b16 %v146
    %v428 = vunpack.c.l.b16 %v147
    %v429 = vunpack.c.h.b16 %v147
    %v430 = vunpack.c.l.b16 %v148
    %v431 = vunpack.c.h.b16 %v148
    %v432 = vunpack.c.l.b16 %v149
    %v433 = vunpack.c.h.b16 %v149
    %v434 = vunpack.c.l.b16 %v150
    %v435 = vunpack.c.h.b16 %v150
    %v436 = vunpack.c.l.b16 %v151
    %v437 = vunpack.c.h.b16 %v151
    %v438 = vunpack.c.l.b16 %v152
    %v439 = vunpack.c.h.b16 %v152
    %v440 = vunpack.c.l.b16 %v153
    %v441 = vunpack.c.h.b16 %v153
    %v442 = vunpack.c.l.b16 %v154
    %v443 = vunpack.c.h.b16 %v154
    %v444 = vunpack.c.l.b16 %v155
    %v445 = vunpack.c.h.b16 %v155
    %v446 = vunpack.c.l.b16 %v156
    %v447 = vunpack.c.h.b16 %v156
    %v448 = vunpack.c.l.b16 %v157
    %v449 = vunpack.c.h.b16 %v157
    %v450 = vunpack.c.l.b16 %v158
    %v451 = vunpack.c.h.b16 %v158
    %v452 = vunpack.c.l.b16 %v159
    %v453 = vunpack.c.h.b16 %v159
    %v454 = vunpack.c.l.b16 %v160
    %v455 = vunpack.c.h.b16 %v160
    %v456 = vunpack.c.l.b16 %v161
    %v457 = vunpack.c.h.b16 %v161
    %v458 = vunpack.c.l.b16 %v162
    %v459 = vunpack.c.h.b16 %v162
    %v460 = vunpack.c.l.b16 %v163
    %v461 = vunpack.c.h.b16 %v163
    %v462 = vunpack.c.l.b16 %v164
    %v463 = vunpack.c.h.b16 %v164
    %v464 = vunpack.c.l.b16 %v165
    %v465 = vunpack.c.h.b16 %v165
    %v466 = vunpack.c.l.b16 %v166
    %v467 = vunpack.c.h.b16 %v166
    %v468 = vunpack.c.l.b16 %v167
    %v469 = vunpack.c.h.b16 %v167
    %v470 = vunpack.c.l.b16 %v168
    %v471 = vunpack.c.h.b16 %v168
    %v472 = vunpack.c.l.b16 %v169
    %v473 = vunpack.c.h.b16 %v169
    %v474 = vunpack.c.l.b16 %v170
    %v475 = vunpack.c.h.b16 %v170
    %v476 = vunpack.c.l.b16 %v171
    %v477 = vunpack.c.h.b16 %v171
    %v478 = vunpack.c.l.b16 %v172
    %v479 = vunpack.c.h.b16 %v172
    %v480 = vunpack.c.l.b16 %v173
    %v481 = vunpack.c.h.b16 %v173
    %v482 = vunpack.c.l.b16 %v174
    %v483 = vunpack.c.h.b16 %v174
    %v484 = vunpack.c.l.b16 %v175
    %v485 = vunpack.c.h.b16 %v175
    %v486 = vunpack.c.l.b16 %v176
    %v487 = vunpack.c.h.b16 %v176
    %v488 = vunpack.c.l.b16 %v177
    %v489 = vunpack.c.h.b16 %v177
    %v490 = vunpack.c.l.b16 %v178
    %v491 = vunpack.c.h.b16 %v178
    %v492 = vunpack.c.l.b16 %v179
    %v493 = vunpack.c.h.b16 %v179
    %v494 = vunpack.c.l.b16 %v180
    %v495 = vunpack.c.h.b16 %v180
    %v496 = vunpack.c.l.b16 %v181
    %v497 = vunpack.c.h.b16 %v181
    %v498 = vunpack.c.l.b16 %v182
    %v499 = vunpack.c.h.b16 %v182
    %v500 = vunpack.c.l.b16 %v183
    %v501 = vunpack.c.h.b16 %v183
    %v502 = vunpack.c.l.b16 %v184
    %v503 = vunpack.c.h.b16 %v184
    %v504 = vunpack.c.l.b16 %v185
    %v505 = vunpack.c.h.b16 %v185
    %v506 = vunpack.c.l.b16 %v186
    %v507 = vunpack.c.h.b16 %v186
    %v508 = vunpack.c.l.b16 %v187
    %v509 = vunpack.c.h.b16 %v187
    %v510 = vunpack.c.l.b16 %v188
    %v511 = vunpack.c.h.b16 %v188
    %v512 = vunpack.c.l.b16 %v189
    %v513 = vunpack.c.h.b16 %v189
    %v514 = vunpack.c.l.b16 %v190
    %v515 = vunpack.c.h.b16 %v190
    %v516 = vunpack.c.l.b16 %v191
    %v517 = vunpack.c.h.b16 %v191
    %v518 = vunpack.c.l.b16 %v192
    %v519 = vunpack.c.h.b16 %v192
    %v520 = vunpack.c.l.b16 %v193
    %v521 = vunpack.c.h.b16 %v193
    %v522 = vunpack.c.l.b16 %v194
    %v523 = vunpack.c.h.b16 %v194
    %v524 = vunpack.c.l.b16 %v195
    %v525 = vunpack.c.h.b16 %v195
    %v526 = vunpack.c.l.b16 %v196
    %v527 = vunpack.c.h.b16 %v196
    %v528 = vunpack.c.l.b16 %v197
    %v529 = vunpack.c.h.b16 %v197
    %v530 = vunpack.c.l.b16 %v198
    %v531 = vunpack.c.h.b16 %v198
    %v532 = vunpack.c.l.b16 %v199
    %v533 = vunpack.c.h.b16 %v199
    %v534 = vunpack.c.l.b16 %v200
    %v535 = vunpack.c.h.b16 %v200
    %v536 = vunpack.c.l.b16 %v201
    %v537 = vunpack.c.h.b16 %v201
    %v538 = vunpack.c.l.b16 %v202
    %v539 = vunpack.c.h.b16 %v202
    %v540 = vunpack.c.l.b16 %v203
    %v541 = vunpack.c.h.b16 %v203
    %v542 = vunpack.c.l.b16 %v204
    %v543 = vunpack.c.h.b16 %v204
    %v544 = vunpack.c.l.b16 %v205
    %v545 = vunpack.c.h.b16 %v205
    %v546 = vunpack.c.l.b16 %v206
    %v547 = vunpack.c.h.b16 %v206
    %v548 = vunpack.c.l.b16 %v207
    %v549 = vunpack.c.h.b16 %v207
    %v550 = vunpack.c.l.b16 %v208
    %v551 = vunpack.c.h.b16 %v208
    %v552 = vunpack.c.l.b16 %v209
    %v553 = vunpack.c.h.b16 %v209
    %v554 = vunpack.c.l.b16 %v210
    %v555 = vunpack.c.h.b16 %v210
    %v556 = vunpack.c.l.b16 %v211
    %v557 = vunpack.c.h.b16 %v211
    %v558 = vunpack.c.l.b16 %v212
    %v559 = vunpack.c.h.b16 %v212
    %v560 = vunpack.c.l.b16 %v213
    %v561 = vunpack.c.h.b16 %v213
    %v562 = vunpack.c.l.b16 %v214
    %v563 = vunpack.c.h.b16 %v214
    %v564 = vunpack.c.l.b16 %v215
    %v565 = vunpack.c.h.b16 %v215
    %v566 = vunpack.c.l.b16 %v216
    %v567 = vunpack.c.h.b16 %v216
    %v568 = vunpack.c.l.b16 %v217
    %v569 = vunpack.c.h.b16 %v217
    %v570 = vunpack.c.l.b16 %v218
    %v571 = vunpack.c.h.b16 %v218
    %v572 = vunpack.c.l.b16 %v219
    %v573 = vunpack.c.h.b16 %v219
    %v574 = vunpack.c.l.b16 %v220
    %v575 = vunpack.c.h.b16 %v220
    %v576 = vunpack.c.l.b16 %v221
    %v577 = vunpack.c.h.b16 %v221
    %v578 = vunpack.c.l.b16 %v222
    %v579 = vunpack.c.h.b16 %v222
    %v580 = vunpack.c.l.b16 %v223
    %v581 = vunpack.c.h.b16 %v223
    %v582 = vunpack.c.l.b16 %v224
    %v583 = vunpack.c.h.b16 %v224
    %v584 = vunpack.c.l.b16 %v225
    %v585 = vunpack.c.h.b16 %v225
    %v586 = vunpack.c.l.b16 %v226
    %v587 = vunpack.c.h.b16 %v226
    %v588 = vunpack.c.l.b16 %v227
    %v589 = vunpack.c.h.b16 %v227
    %v590 = vunpack.c.l.b16 %v228
    %v591 = vunpack.c.h.b16 %v228
    %v592 = vunpack.c.l.b16 %v229
    %v593 = vunpack.c.h.b16 %v229
    %v594 = vunpack.c.l.b16 %v230
    %v595 = vunpack.c.h.b16 %v230
    %v596 = vunpack.c.l.b16 %v231
    %v597 = vunpack.c.h.b16 %v231
    %v598 = vunpack.c.l.b16 %v232
    %v599 = vunpack.c.h.b16 %v232
    %v600 = vunpack.c.l.b16 %v233
    %v601 = vunpack.c.h.b16 %v233
    %v602 = vunpack.c.l.b16 %v234
    %v603 = vunpack.c.h.b16 %v234
    %v604 = vunpack.c.l.b16 %v235
    %v605 = vunpack.c.h.b16 %v235
    %v606 = vunpack.c.l.b16 %v236
    %v607 = vunpack.c.h.b16 %v236
    %v608 = vunpack.c.l.b16 %v237
    %v609 = vunpack.c.h.b16 %v237
    %v610 = vunpack.c.l.b16 %v238
    %v611 = vunpack.c.h.b16 %v238
    %v612 = vunpack.c.l.b16 %v239
    %v613 = vunpack.c.h.b16 %v239
    %v614 = vunpack.c.l.b16 %v240
    %v615 = vunpack.c.h.b16 %v240
    %v616 = vunpack.c.l.b16 %v241
    %v617 = vunpack.c.h.b16 %v241
    %v618 = vunpack.c.l.b16 %v242
    %v619 = vunpack.c.h.b16 %v242
    %v620 = vunpack.c.l.b16 %v243
    %v621 = vunpack.c.h.b16 %v243
    %v622 = vunpack.c.l.b16 %v244
    %v623 = vunpack.c.h.b16 %v244
    %v624 = vunpack.c.l.b16 %v245
    %v625 = vunpack.c.h.b16 %v245
    %v626 = vunpack.c.l.b16 %v246
    %v627 = vunpack.c.h.b16 %v246
    %v628 = vunpack.c.l.b16 %v247
    %v629 = vunpack.c.h.b16 %v247
    %v630 = vunpack.c.l.b16 %v248
    %v631 = vunpack.c.h.b16 %v248
    %v632 = vunpack.c.l.b16 %v249
    %v633 = vunpack.c.h.b16 %v249
    %v634 = vunpack.c.l.b16 %v250
    %v635 = vunpack.c.h.b16 %v250
    %v636 = vunpack.c.l.b16 %v251
    %v637 = vunpack.c.h.b16 %v251
    %v638 = vunpack.c.l.b16 %v252
    %v639 = vunpack.c.h.b16 %v252
    %v640 = vpack.c.b16 %v392, %v390
    %v641 = vpack.c.b16 %v393, %v391
    %v642 = vpack.c.b16 %v396, %v394
    %v643 = vpack.c.b16 %v397, %v395
    %v644 = vpack.c.b16 %v400, %v398
    %v645 = vpack.c.b16 %v401, %v399
    %v646 = vpack.c.b16 %v404, %v402
    %v647 = vpack.c.b16 %v405, %v403
    %v648 = vpack.c.b16 %v408, %v406
    %v649 = vpack.c.b16 %v409, %v407
    %v650 = vpack.c.b16 %v412, %v410
    %v651 = vpack.c.b16 %v413, %v411
    %v652 = vpack.c.b16 %v416, %v414
    %v653 = vpack.c.b16 %v417, %v415
    %v654 = vpack.c.b16 %v420, %v418
    %v655 = vpack.c.b16 %v421, %v419
    %v656 = vpack.c.b16 %v424, %v422
    %v657 = vpack.c.b16 %v425, %v423
    %v658 = vpack.c.b16 %v428, %v426
    %v659 = vpack.c.b16 %v429, %v427
    %v660 = vpack.c.b16 %v432, %v430
    %v661 = vpack.c.b16 %v433, %v431
    %v662 = vpack.c.b16 %v436, %v434
    %v663 = vpack.c.b16 %v437, %v435
    %v664 = vpack.c.b16 %v440, %v438
    %v665 = vpack.c.b16 %v441, %v439
    %v666 = vpack.c.b16 %v444, %v442
    %v667 = vpack.c.b16 %v445, %v443
    %v668 = vpack.c.b16 %v448, %v446
    %v669 = vpack.c.b16 %v449, %v447
    %v670 = vpack.c.b16 %v452, %v450
    %v671 = vpack.c.b16 %v453, %v451
    %v672 = vpack.c.b16 %v456, %v454
    %v673 = vpack.c.b16 %v457, %v455
    %v674 = vpack.c.b16 %v460, %v458
    %v675 = vpack.c.b16 %v461, %v459
    %v676 = vpack.c.b16 %v464, %v462
    %v677 = vpack.c.b16 %v465, %v463
    %v678 = vpack.c.b16 %v468, %v466
    %v679 = vpack.c.b16 %v469, %v467
    %v680 = vpack.c.b16 %v472, %v470
    %v681 = vpack.c.b16 %v473, %v471
    %v682 = vpack.c.b16 %v476, %v474
    %v683 = vpack.c.b16 %v477, %v475
    %v684 = vpack.c.b16 %v480, %v478
    %v685 = vpack.c.b16 %v481, %v479
    %v686 = vpack.c.b16 %v484, %v482
    %v687 = vpack.c.b16 %v485, %v483
    %v688 = vpack.c.b16 %v488, %v486
    %v689 = vpack.c.b16 %v489, %v487
    %v690 = vpack.c.b16 %v492, %v490
    %v691 = vpack.c.b16 %v493, %v491
    %v692 = vpack.c.b16 %v496, %v494
    %v693 = vpack.c.b16 %v497, %v495
    %v694 = vpack.c.b16 %v500, %v498
    %v695 = vpack.c.b16 %v501, %v499
    %v696 = vpack.c.b16 %v504, %v502
    %v697 = vpack.c.b16 %v505, %v503
    %v698 = vpack.c.b16 %v508, %v506
    %v699 = vpack.c.b16 %v509, %v507
    %v700 = vpack.c.b16 %v512, %v510
    %v701 = vpack.c.b16 %v513, %v511
    %v702 = vpack.c.b16 %v516, %v514
    %v703 = vpack.c.b16 %v517, %v515
    %v704 = vpack.c.b16 %v520, %v518
    %v705 = vpack.c.b16 %v521, %v519
    %v706 = vpack.c.b16 %v524, %v522
    %v707 = vpack.c.b16 %v525, %v523
    %v708 = vpack.c.b16 %v528, %v526
    %v709 = vpack.c.b16 %v529, %v527
    %v710 = vpack.c.b16 %v532, %v530
    %v711 = vpack.c.b16 %v533, %v531
    %v712 = vpack.c.b16 %v536, %v534
    %v713 = vpack.c.b16 %v537, %v535
    %v714 = vpack.c.b16 %v540, %v538
    %v715 = vpack.c.b16 %v541, %v539
    %v716 = vpack.c.b16 %v544, %v542
    %v717 = vpack.c.b16 %v545, %v543
    %v718 = vpack.c.b16 %v548, %v546
    %v719 = vpack.c.b16 %v549, %v547
    %v720 = vpack.c.b16 %v552, %v550
    %v721 = vpack.c.b16 %v553, %v551
    %v722 = vpack.c.b16 %v556, %v554
    %v723 = vpack.c.b16 %v557, %v555
    %v724 = vpack.c.b16 %v560, %v558
    %v725 = vpack.c.b16 %v561, %v559
    %v726 = vpack.c.b16 %v564, %v562
    %v727 = vpack.c.b16 %v565, %v563
    %v728 = vpack.c.b16 %v568, %v566
    %v729 = vpack.c.b16 %v569, %v567
    %v730 = vpack.c.b16 %v572, %v570
    %v731 = vpack.c.b16 %v573, %v571
    %v732 = vpack.c.b16 %v576, %v574
    %v733 = vpack.c.b16 %v577, %v575
    %v734 = vpack.c.b16 %v580, %v578
    %v735 = vpack.c.b16 %v581, %v579
    %v736 = vpack.c.b16 %v584, %v582
    %v737 = vpack.c.b16 %v585, %v583
    %v738 = vpack.c.b16 %v588, %v586
    %v739 = vpack.c.b16 %v589, %v587
    %v740 = vpack.c.b16 %v592, %v590
    %v741 = vpack.c.b16 %v593, %v591
    %v742 = vpack.c.b16 %v596, %v594
    %v743 = vpack.c.b16 %v597, %v595
    %v744 = vpack.c.b16 %v600, %v598
    %v745 = vpack.c.b16 %v601, %v599
    %v746 = vpack.c.b16 %v604, %v602
    %v747 = vpack.c.b16 %v605, %v603
    %v748 = vpack.c.b16 %v608, %v606
    %v749 = vpack.c.b16 %v609, %v607
    %v750 = vpack.c.b16 %v612, %v610
    %v751 = vpack.c.b16 %v613, %v611
    %v752 = vpack.c.b16 %v616, %v614
    %v753 = vpack.c.b16 %v617, %v615
    %v754 = vpack.c.b16 %v620, %v618
    %v755 = vpack.c.b16 %v621, %v619
    %v756 = vpack.c.b16 %v624, %v622
    %v757 = vpack.c.b16 %v625, %v623
    %v758 = vpack.c.b16 %v628, %v626
    %v759 = vpack.c.b16 %v629, %v627
    %v760 = vpack.c.b16 %v632, %v630
    %v761 = vpack.c.b16 %v633, %v631
    %v762 = vpack.c.b16 %v636, %v634
    %v763 = vpack.c.b16 %v637, %v635
    %v764 = vpack.c.b16 %v638, %v638
    %v765 = vpack.c.b16 %v639, %v639
    %vm890 = vcmask 850944
    %v892 = vsel %vm890, %v127, 0
    %vm894 = vcmask 1043456
    %v896 = vsel %vm894, %v764, 0
    %v899 = vsel %vm894, %v765, 0
    %901 = vmatprep.subr.bf16.mxu0 %v641
    %902 = vmatpush1.bf16.msra.mxu0 %v640
    %903 = vmatprep.subr.bf16.mxu0 %v643
    %904 = vmatpush1.bf16.msra.mxu0 %v642
    %905 = vmatprep.subr.bf16.mxu0 %v645
    %906 = vmatpush1.bf16.msra.mxu0 %v644
    %907 = vmatprep.subr.bf16.mxu0 %v647
    %908 = vmatpush1.bf16.msra.mxu0 %v646
    %909 = vmatprep.subr.bf16.mxu0 %v649
    %910 = vmatpush1.bf16.msra.mxu0 %v648
    %911 = vmatprep.subr.bf16.mxu0 %v651
    %912 = vmatpush1.bf16.msra.mxu0 %v650
    %913 = vmatprep.subr.bf16.mxu0 %v653
    %914 = vmatpush1.bf16.msra.mxu0 %v652
    %915 = vmatprep.subr.bf16.mxu0 %v655
    %916 = vmatpush1.bf16.msra.mxu0 %v654
    %917 = vmatprep.subr.bf16.mxu0 %v657
    %918 = vmatpush1.bf16.msra.mxu0 %v656
    %919 = vmatprep.subr.bf16.mxu0 %v659
    %920 = vmatpush1.bf16.msra.mxu0 %v658
    %921 = vmatprep.subr.bf16.mxu0 %v661
    %922 = vmatpush1.bf16.msra.mxu0 %v660
    %923 = vmatprep.subr.bf16.mxu0 %v663
    %924 = vmatpush1.bf16.msra.mxu0 %v662
    %925 = vmatprep.subr.bf16.mxu0 %v665
    %926 = vmatpush1.bf16.msra.mxu0 %v664
    %927 = vmatprep.subr.bf16.mxu0 %v667
    %928 = vmatpush1.bf16.msra.mxu0 %v666
    %929 = vmatprep.subr.bf16.mxu0 %v669
    %930 = vmatpush1.bf16.msra.mxu0 %v668
    %931 = vmatprep.subr.bf16.mxu0 %v671
    %932 = vmatpush1.bf16.msra.mxu0 %v670
    %933 = vmatprep.mubr.bf16.mxu0 %v121
    %934 = vmatmul.mubr.bf16.gmra.mrb[0].mxu0 %v120
    %v935 = vpop.f32.mrb[0].mxu0
    %v936 = vadd.f32 %v258, %v935
    %v937 = vpop.f32.mrb[0].mxu0
    %v938 = vadd.f32 %v262, %v937
    %v939 = vpop.f32.mrb[0].mxu0
    %v940 = vpop.f32.mrb[0].mxu0
    %941 = vdwg.mxu0
    %942 = vmatprep.subr.bf16.mxu0 %v673
    %943 = vmatpush1.bf16.msra.mxu0 %v672
    %944 = vmatprep.subr.bf16.mxu0 %v675
    %945 = vmatpush1.bf16.msra.mxu0 %v674
    %946 = vmatprep.subr.bf16.mxu0 %v677
    %947 = vmatpush1.bf16.msra.mxu0 %v676
    %948 = vmatprep.subr.bf16.mxu0 %v679
    %949 = vmatpush1.bf16.msra.mxu0 %v678
    %950 = vmatprep.subr.bf16.mxu0 %v681
    %951 = vmatpush1.bf16.msra.mxu0 %v680
    %952 = vmatprep.subr.bf16.mxu0 %v683
    %953 = vmatpush1.bf16.msra.mxu0 %v682
    %954 = vmatprep.subr.bf16.mxu0 %v685
    %955 = vmatpush1.bf16.msra.mxu0 %v684
    %956 = vmatprep.subr.bf16.mxu0 %v687
    %957 = vmatpush1.bf16.msra.mxu0 %v686
    %958 = vmatprep.subr.bf16.mxu0 %v689
    %959 = vmatpush1.bf16.msra.mxu0 %v688
    %960 = vmatprep.subr.bf16.mxu0 %v691
    %961 = vmatpush1.bf16.msra.mxu0 %v690
    %962 = vmatprep.subr.bf16.mxu0 %v693
    %963 = vmatpush1.bf16.msra.mxu0 %v692
    %964 = vmatprep.subr.bf16.mxu0 %v695
    %965 = vmatpush1.bf16.msra.mxu0 %v694
    %966 = vmatprep.subr.bf16.mxu0 %v697
    %967 = vmatpush1.bf16.msra.mxu0 %v696
    %968 = vmatprep.subr.bf16.mxu0 %v699
    %969 = vmatpush1.bf16.msra.mxu0 %v698
    %970 = vmatprep.subr.bf16.mxu0 %v701
    %971 = vmatpush1.bf16.msra.mxu0 %v700
    %972 = vmatprep.subr.bf16.mxu0 %v703
    %973 = vmatpush1.bf16.msra.mxu0 %v702
    %974 = vmatprep.mubr.bf16.mxu0 %v123
    %975 = vmatmul.mubr.bf16.gmra.mrb[0].mxu0 %v122
    %v976 = vpop.f32.mrb[0].mxu0
    %v977 = vadd.f32 %v936, %v976
    %v978 = vpop.f32.mrb[0].mxu0
    %v979 = vadd.f32 %v938, %v978
    %v980 = vpop.f32.mrb[0].mxu0
    %v981 = vpop.f32.mrb[0].mxu0
    %982 = vdwg.mxu0
    %983 = vmatprep.subr.bf16.mxu0 %v705
    %984 = vmatpush1.bf16.msra.mxu0 %v704
    %985 = vmatprep.subr.bf16.mxu0 %v707
    %986 = vmatpush1.bf16.msra.mxu0 %v706
    %987 = vmatprep.subr.bf16.mxu0 %v709
    %988 = vmatpush1.bf16.msra.mxu0 %v708
    %989 = vmatprep.subr.bf16.mxu0 %v711
    %990 = vmatpush1.bf16.msra.mxu0 %v710
    %991 = vmatprep.subr.bf16.mxu0 %v713
    %992 = vmatpush1.bf16.msra.mxu0 %v712
    %993 = vmatprep.subr.bf16.mxu0 %v715
    %994 = vmatpush1.bf16.msra.mxu0 %v714
    %995 = vmatprep.subr.bf16.mxu0 %v717
    %996 = vmatpush1.bf16.msra.mxu0 %v716
    %997 = vmatprep.subr.bf16.mxu0 %v719
    %998 = vmatpush1.bf16.msra.mxu0 %v718
    %999 = vmatprep.subr.bf16.mxu0 %v721
    %1000 = vmatpush1.bf16.msra.mxu0 %v720
    %1001 = vmatprep.subr.bf16.mxu0 %v723
    %1002 = vmatpush1.bf16.msra.mxu0 %v722
    %1003 = vmatprep.subr.bf16.mxu0 %v725
    %1004 = vmatpush1.bf16.msra.mxu0 %v724
    %1005 = vmatprep.subr.bf16.mxu0 %v727
    %1006 = vmatpush1.bf16.msra.mxu0 %v726
    %1007 = vmatprep.subr.bf16.mxu0 %v729
    %1008 = vmatpush1.bf16.msra.mxu0 %v728
    %1009 = vmatprep.subr.bf16.mxu0 %v731
    %1010 = vmatpush1.bf16.msra.mxu0 %v730
    %1011 = vmatprep.subr.bf16.mxu0 %v733
    %1012 = vmatpush1.bf16.msra.mxu0 %v732
    %1013 = vmatprep.subr.bf16.mxu0 %v735
    %1014 = vmatpush1.bf16.msra.mxu0 %v734
    %1015 = vmatprep.mubr.bf16.mxu0 %v125
    %1016 = vmatmul.mubr.bf16.gmra.mrb[0].mxu0 %v124
    %v1017 = vpop.f32.mrb[0].mxu0
    %v1018 = vadd.f32 %v977, %v1017
    %v1019 = vpop.f32.mrb[0].mxu0
    %v1020 = vadd.f32 %v979, %v1019
    %v1021 = vpop.f32.mrb[0].mxu0
    %v1022 = vpop.f32.mrb[0].mxu0
    %1023 = vdwg.mxu0
    %1024 = vmatprep.subr.bf16.mxu0 %v737
    %1025 = vmatpush1.bf16.msra.mxu0 %v736
    %1026 = vmatprep.subr.bf16.mxu0 %v739
    %1027 = vmatpush1.bf16.msra.mxu0 %v738
    %1028 = vmatprep.subr.bf16.mxu0 %v741
    %1029 = vmatpush1.bf16.msra.mxu0 %v740
    %1030 = vmatprep.subr.bf16.mxu0 %v743
    %1031 = vmatpush1.bf16.msra.mxu0 %v742
    %1032 = vmatprep.subr.bf16.mxu0 %v745
    %1033 = vmatpush1.bf16.msra.mxu0 %v744
    %1034 = vmatprep.subr.bf16.mxu0 %v747
    %1035 = vmatpush1.bf16.msra.mxu0 %v746
    %1036 = vmatprep.subr.bf16.mxu0 %v749
    %1037 = vmatpush1.bf16.msra.mxu0 %v748
    %1038 = vmatprep.subr.bf16.mxu0 %v751
    %1039 = vmatpush1.bf16.msra.mxu0 %v750
    %1040 = vmatprep.subr.bf16.mxu0 %v753
    %1041 = vmatpush1.bf16.msra.mxu0 %v752
    %1042 = vmatprep.subr.bf16.mxu0 %v755
    %1043 = vmatpush1.bf16.msra.mxu0 %v754
    %1044 = vmatprep.subr.bf16.mxu0 %v757
    %1045 = vmatpush1.bf16.msra.mxu0 %v756
    %1046 = vmatprep.subr.bf16.mxu0 %v759
    %1047 = vmatpush1.bf16.msra.mxu0 %v758
    %1048 = vmatprep.subr.bf16.mxu0 %v761
    %1049 = vmatpush1.bf16.msra.mxu0 %v760
    %1050 = vmatprep.subr.bf16.mxu0 %v763
    %1051 = vmatpush1.bf16.msra.mxu0 %v762
    %1052 = vmatprep.subr.bf16.mxu0 %v899
    %1053 = vmatpush1.bf16.msra.mxu0 %v896
    %1054 = vmatprep.subr.bf16.mxu0 0
    %1055 = vmatpush1.bf16.msra.mxu0 0
    %1056 = vmatprep.mubr.bf16.mxu0 %v892
    %1057 = vmatmul.mubr.bf16.gmra.mrb[0].mxu0 %v126
    %v1058 = vpop.f32.mrb[0].mxu0
    %v1059 = vadd.f32 %v1018, %v1058
    %v1060 = vpop.f32.mrb[0].mxu0
    %v1061 = vadd.f32 %v1020, %v1060
    %v1062 = vpop.f32.mrb[0].mxu0
    %v1063 = vpop.f32.mrb[0].mxu0
    %1064 = vdwg.mxu0
    %v1065 = vmax.f32 %v1059, 0.0
    %v1066 = vmax.f32 %v1061, 0.0
    %v1067 = vpack.c.bf16 %v1065, %v1065
    %v1068 = vpack.c.bf16 %v1066, %v1066
    %v1069 = vld [vmem:[%s3] sm:$0xf]
    %v1070 = vld [vmem:[%s3 + $0x4] sm:$0xf]
    %v1071 = vld [vmem:[%s3 + $0x8] sm:$0xf]
    %v1072 = vld [vmem:[%s3 + $0xc] sm:$0xf]
    %v1073 = vld [vmem:[%s3 + $0x10] sm:$0xf]
    %v1074 = vld [vmem:[%s3 + $0x14] sm:$0xf]
    %v1075 = vld [vmem:[%s3 + $0x18] sm:$0xf]
    %v1076 = vld [vmem:[%s3 + $0x1c] sm:$0xf]
    %v1077 = vld [vmem:[%s3 + $0x20] sm:$0xf]
    %v1078 = vld [vmem:[%s3 + $0x24] sm:$0xf]
    %v1079 = vld [vmem:[%s3 + $0x28] sm:$0xf]
    %v1080 = vld [vmem:[%s3 + $0x2c] sm:$0xf]
    %v1081 = vld [vmem:[%s3 + $0x30] sm:$0xf]
    %v1082 = vld [vmem:[%s3 + $0x34] sm:$0xf]
    %v1083 = vld [vmem:[%s3 + $0x38] sm:$0xf]
    %v1084 = vld [vmem:[%s3 + $0x3c] sm:$0xf]
    %v1085 = vld [vmem:[%s3 + $0x40] sm:$0xf]
    %v1086 = vld [vmem:[%s3 + $0x44] sm:$0xf]
    %v1087 = vld [vmem:[%s3 + $0x48] sm:$0xf]
    %v1088 = vld [vmem:[%s3 + $0x4c] sm:$0xf]
    %v1089 = vld [vmem:[%s3 + $0x50] sm:$0xf]
    %v1090 = vld [vmem:[%s3 + $0x54] sm:$0xf]
    %v1091 = vld [vmem:[%s3 + $0x58] sm:$0xf]
    %v1092 = vld [vmem:[%s3 + $0x5c] sm:$0xf]
    %v1093 = vld [vmem:[%s3 + $0x60] sm:$0xf]
    %v1094 = vld [vmem:[%s3 + $0x64] sm:$0xf]
    %v1095 = vld [vmem:[%s3 + $0x68] sm:$0xf]
    %v1096 = vld [vmem:[%s3 + $0x6c] sm:$0xf]
    %v1097 = vld [vmem:[%s3 + $0x70] sm:$0xf]
    %v1098 = vld [vmem:[%s3 + $0x74] sm:$0xf]
    %v1099 = vld [vmem:[%s3 + $0x78] sm:$0xf]
    %v1100 = vld [vmem:[%s3 + $0x7c] sm:$0xf]
    %v1101 = vld [vmem:[%s4] sm:$0x1]
    %v1103 = vlaneseq
    %v1104 = vshrl.u32 %v1103, 7
    %v1105 = vsub.s32 0, %v1104
    %v1106 = vrot.slane %v1101, %v1105
    %v1140 = vunpack.c.l.b16 %v1069
    %v1141 = vunpack.c.l.b16 %v1070
    %v1142 = vunpack.c.l.b16 %v1071
    %v1143 = vunpack.c.l.b16 %v1072
    %v1144 = vunpack.c.l.b16 %v1073
    %v1145 = vunpack.c.l.b16 %v1074
    %v1146 = vunpack.c.l.b16 %v1075
    %v1147 = vunpack.c.l.b16 %v1076
    %v1148 = vunpack.c.l.b16 %v1077
    %v1149 = vunpack.c.l.b16 %v1078
    %v1150 = vunpack.c.l.b16 %v1079
    %v1151 = vunpack.c.l.b16 %v1080
    %v1152 = vunpack.c.l.b16 %v1081
    %v1153 = vunpack.c.l.b16 %v1082
    %v1154 = vunpack.c.l.b16 %v1083
    %v1155 = vunpack.c.l.b16 %v1084
    %v1156 = vunpack.c.l.b16 %v1085
    %v1157 = vunpack.c.l.b16 %v1086
    %v1158 = vunpack.c.l.b16 %v1087
    %v1159 = vunpack.c.l.b16 %v1088
    %v1160 = vunpack.c.l.b16 %v1089
    %v1161 = vunpack.c.l.b16 %v1090
    %v1162 = vunpack.c.l.b16 %v1091
    %v1163 = vunpack.c.l.b16 %v1092
    %v1164 = vunpack.c.l.b16 %v1093
    %v1165 = vunpack.c.l.b16 %v1094
    %v1166 = vunpack.c.l.b16 %v1095
    %v1167 = vunpack.c.l.b16 %v1096
    %v1168 = vunpack.c.l.b16 %v1097
    %v1169 = vunpack.c.l.b16 %v1098
    %v1170 = vunpack.c.l.b16 %v1099
    %v1171 = vunpack.c.l.b16 %v1100
    %v1172 = vpack.c.b16 %v1141, %v1140
    %v1173 = vpack.c.b16 %v1143, %v1142
    %v1174 = vpack.c.b16 %v1145, %v1144
    %v1175 = vpack.c.b16 %v1147, %v1146
    %v1176 = vpack.c.b16 %v1149, %v1148
    %v1177 = vpack.c.b16 %v1151, %v1150
    %v1178 = vpack.c.b16 %v1153, %v1152
    %v1179 = vpack.c.b16 %v1155, %v1154
    %v1180 = vpack.c.b16 %v1157, %v1156
    %v1181 = vpack.c.b16 %v1159, %v1158
    %v1182 = vpack.c.b16 %v1161, %v1160
    %v1183 = vpack.c.b16 %v1163, %v1162
    %v1184 = vpack.c.b16 %v1165, %v1164
    %v1185 = vpack.c.b16 %v1167, %v1166
    %v1186 = vpack.c.b16 %v1169, %v1168
    %v1187 = vpack.c.b16 %v1171, %v1170
    %1204 = vmatprep.subr.bf16.mxu0 0
    %1205 = vmatpush1.bf16.msra.mxu0 %v1172
    %1206 = vmatprep.subr.bf16.mxu0 0
    %1207 = vmatpush1.bf16.msra.mxu0 %v1173
    %1208 = vmatprep.subr.bf16.mxu0 0
    %1209 = vmatpush1.bf16.msra.mxu0 %v1174
    %1210 = vmatprep.subr.bf16.mxu0 0
    %1211 = vmatpush1.bf16.msra.mxu0 %v1175
    %1212 = vmatprep.subr.bf16.mxu0 0
    %1213 = vmatpush1.bf16.msra.mxu0 %v1176
    %1214 = vmatprep.subr.bf16.mxu0 0
    %1215 = vmatpush1.bf16.msra.mxu0 %v1177
    %1216 = vmatprep.subr.bf16.mxu0 0
    %1217 = vmatpush1.bf16.msra.mxu0 %v1178
    %1218 = vmatprep.subr.bf16.mxu0 0
    %1219 = vmatpush1.bf16.msra.mxu0 %v1179
    %1220 = vmatprep.subr.bf16.mxu0 0
    %1221 = vmatpush1.bf16.msra.mxu0 %v1180
    %1222 = vmatprep.subr.bf16.mxu0 0
    %1223 = vmatpush1.bf16.msra.mxu0 %v1181
    %1224 = vmatprep.subr.bf16.mxu0 0
    %1225 = vmatpush1.bf16.msra.mxu0 %v1182
    %1226 = vmatprep.subr.bf16.mxu0 0
    %1227 = vmatpush1.bf16.msra.mxu0 %v1183
    %1228 = vmatprep.subr.bf16.mxu0 0
    %1229 = vmatpush1.bf16.msra.mxu0 %v1184
    %1230 = vmatprep.subr.bf16.mxu0 0
    %1231 = vmatpush1.bf16.msra.mxu0 %v1185
    %1232 = vmatprep.subr.bf16.mxu0 0
    %1233 = vmatpush1.bf16.msra.mxu0 %v1186
    %1234 = vmatprep.subr.bf16.mxu0 0
    %1235 = vmatpush1.bf16.msra.mxu0 %v1187
    %1236 = vmatprep.mubr.bf16.mxu0 %v1068
    %1237 = vmatmul.mubr.bf16.gmra.mrb[0].mxu0 %v1067
    %v1238 = vpop.f32.mrb[0].mxu0
    %v1239 = vadd.f32 %v1106, %v1238
    %v1240 = vpop.f32.mrb[0].mxu0
    %v1241 = vpop.f32.mrb[0].mxu0
    %v1242 = vpop.f32.mrb[0].mxu0
    %1243 = vdwg.mxu0
    %v1244 = vmax.f32 %v1239, 0.0
    %v1245 = vpack.c.bf16 %v1244, %v1244
    %v1246 = vld [vmem:[#allocation7] sm:$0xff]
    %v1247 = vld [vmem:[#allocation7 + $0x8] sm:$0xff]
    %v1248 = vld [vmem:[#allocation7 + $0x10] sm:$0xff]
    %v1249 = vld [vmem:[#allocation7 + $0x18] sm:$0xff]
    %v1250 = vld [vmem:[#allocation7 + $0x20] sm:$0xff]
    %v1251 = vld [vmem:[#allocation7 + $0x28] sm:$0xff]
    %v1252 = vld [vmem:[#allocation7 + $0x30] sm:$0xff]
    %v1253 = vld [vmem:[#allocation7 + $0x38] sm:$0xff]
    %v1254 = vld [vmem:[#allocation7 + $0x40] sm:$0xff]
    %v1255 = vld [vmem:[#allocation7 + $0x48] sm:$0xff]
    %v1256 = vld [vmem:[#allocation7 + $0x50] sm:$0xff]
    %v1257 = vld [vmem:[#allocation7 + $0x58] sm:$0xff]
    %v1258 = vld [vmem:[#allocation7 + $0x60] sm:$0xff]
    %v1259 = vld [vmem:[#allocation7 + $0x68] sm:$0xff]
    %v1260 = vld [vmem:[#allocation7 + $0x70] sm:$0xff]
    %v1261 = vld [vmem:[#allocation7 + $0x78] sm:$0xff]
    %v1262 = vld [vmem:[%s6] sm:$0x3]
    %v1264 = vlaneseq
    %v1265 = vshrl.u32 %v1264, 7
    %v1266 = vsub.s32 0, %v1265
    %v1267 = vrot.slane %v1262, %v1266
    %v1268 = vlaneseq
    %v1269 = vshrl.u32 %v1268, 7
    %v1270 = vsub.s32 1, %v1269
    %v1271 = vrot.slane %v1262, %v1270
    %v1290 = vunpack.c.l.b16 %v1246
    %v1291 = vunpack.c.h.b16 %v1246
    %v1292 = vunpack.c.l.b16 %v1247
    %v1293 = vunpack.c.h.b16 %v1247
    %v1294 = vunpack.c.l.b16 %v1248
    %v1295 = vunpack.c.h.b16 %v1248
    %v1296 = vunpack.c.l.b16 %v1249
    %v1297 = vunpack.c.h.b16 %v1249
    %v1298 = vunpack.c.l.b16 %v1250
    %v1299 = vunpack.c.h.b16 %v1250
    %v1300 = vunpack.c.l.b16 %v1251
    %v1301 = vunpack.c.h.b16 %v1251
    %v1302 = vunpack.c.l.b16 %v1252
    %v1303 = vunpack.c.h.b16 %v1252
    %v1304 = vunpack.c.l.b16 %v1253
    %v1305 = vunpack.c.h.b16 %v1253
    %v1306 = vunpack.c.l.b16 %v1254
    %v1307 = vunpack.c.h.b16 %v1254
    %v1308 = vunpack.c.l.b16 %v1255
    %v1309 = vunpack.c.h.b16 %v1255
    %v1310 = vunpack.c.l.b16 %v1256
    %v1311 = vunpack.c.h.b16 %v1256
    %v1312 = vunpack.c.l.b16 %v1257
    %v1313 = vunpack.c.h.b16 %v1257
    %v1314 = vunpack.c.l.b16 %v1258
    %v1315 = vunpack.c.h.b16 %v1258
    %v1316 = vunpack.c.l.b16 %v1259
    %v1317 = vunpack.c.h.b16 %v1259
    %v1318 = vunpack.c.l.b16 %v1260
    %v1319 = vunpack.c.h.b16 %v1260
    %v1320 = vunpack.c.l.b16 %v1261
    %v1321 = vunpack.c.h.b16 %v1261
    %v1322 = vpack.c.b16 %v1292, %v1290
    %v1323 = vpack.c.b16 %v1293, %v1291
    %v1324 = vpack.c.b16 %v1296, %v1294
    %v1325 = vpack.c.b16 %v1297, %v1295
    %v1326 = vpack.c.b16 %v1300, %v1298
    %v1327 = vpack.c.b16 %v1301, %v1299
    %v1328 = vpack.c.b16 %v1304, %v1302
    %v1329 = vpack.c.b16 %v1305, %v1303
    %v1330 = vpack.c.b16 %v1308, %v1306
    %v1331 = vpack.c.b16 %v1309, %v1307
    %v1332 = vpack.c.b16 %v1312, %v1310
    %v1333 = vpack.c.b16 %v1313, %v1311
    %v1334 = vpack.c.b16 %v1316, %v1314
    %v1335 = vpack.c.b16 %v1317, %v1315
    %v1336 = vpack.c.b16 %v1320, %v1318
    %v1337 = vpack.c.b16 %v1321, %v1319
    %1354 = vmatprep.subr.bf16.mxu0 %v1323
    %1355 = vmatpush1.bf16.msra.mxu0 %v1322
    %1356 = vmatprep.subr.bf16.mxu0 %v1325
    %1357 = vmatpush1.bf16.msra.mxu0 %v1324
    %1358 = vmatprep.subr.bf16.mxu0 %v1327
    %1359 = vmatpush1.bf16.msra.mxu0 %v1326
    %1360 = vmatprep.subr.bf16.mxu0 %v1329
    %1361 = vmatpush1.bf16.msra.mxu0 %v1328
    %1362 = vmatprep.subr.bf16.mxu0 %v1331
    %1363 = vmatpush1.bf16.msra.mxu0 %v1330
    %1364 = vmatprep.subr.bf16.mxu0 %v1333
    %1365 = vmatpush1.bf16.msra.mxu0 %v1332
    %1366 = vmatprep.subr.bf16.mxu0 %v1335
    %1367 = vmatpush1.bf16.msra.mxu0 %v1334
    %1368 = vmatprep.subr.bf16.mxu0 %v1337
    %1369 = vmatpush1.bf16.msra.mxu0 %v1336
    %1370 = vmatprep.subr.bf16.mxu0 0
    %1371 = vmatpush1.bf16.msra.mxu0 0
    %1372 = vmatprep.subr.bf16.mxu0 0
    %1373 = vmatpush1.bf16.msra.mxu0 0
    %1374 = vmatprep.subr.bf16.mxu0 0
    %1375 = vmatpush1.bf16.msra.mxu0 0
    %1376 = vmatprep.subr.bf16.mxu0 0
    %1377 = vmatpush1.bf16.msra.mxu0 0
    %1378 = vmatprep.subr.bf16.mxu0 0
    %1379 = vmatpush1.bf16.msra.mxu0 0
    %1380 = vmatprep.subr.bf16.mxu0 0
    %1381 = vmatpush1.bf16.msra.mxu0 0
    %1382 = vmatprep.subr.bf16.mxu0 0
    %1383 = vmatpush1.bf16.msra.mxu0 0
    %1384 = vmatprep.subr.bf16.mxu0 0
    %1385 = vmatpush1.bf16.msra.mxu0 0
    %1386 = vmatprep.mubr.bf16.mxu0 0
    %1387 = vmatmul.mubr.bf16.gmra.mrb[0].mxu0 %v1245
    %v1388 = vpop.f32.mrb[0].mxu0
    %v1389 = vadd.f32 %v1267, %v1388
    %v1390 = vpop.f32.mrb[0].mxu0
    %v1391 = vadd.f32 %v1271, %v1390
    %v1392 = vpop.f32.mrb[0].mxu0
    %v1393 = vpop.f32.mrb[0].mxu0
    %1394 = vdwg.mxu0
    %v1395 = vmax.f32 %v1389, 0.0
    %v1396 = vmax.f32 %v1391, 0.0
    %v1397 = vpack.c.bf16 %v1395, %v1395
    %v1398 = vpack.c.bf16 %v1396, %v1396
    %v1399 = vld [vmem:[#allocation8] sm:$0xf]
    %v1400 = vld [vmem:[#allocation8 + $0x4] sm:$0xf]
    %v1401 = vld [vmem:[#allocation8 + $0x8] sm:$0xf]
    %v1402 = vld [vmem:[#allocation8 + $0xc] sm:$0xf]
    %v1403 = vld [vmem:[#allocation8 + $0x10] sm:$0xf]
    %v1404 = vld [vmem:[#allocation8 + $0x14] sm:$0xf]
    %v1405 = vld [vmem:[#allocation8 + $0x18] sm:$0xf]
    %v1406 = vld [vmem:[#allocation8 + $0x1c] sm:$0xf]
    %v1407 = vld [vmem:[#allocation8 + $0x20] sm:$0xf]
    %v1408 = vld [vmem:[#allocation8 + $0x24] sm:$0xf]
    %v1409 = vld [vmem:[#allocation8 + $0x28] sm:$0xf]
    %v1410 = vld [vmem:[#allocation8 + $0x2c] sm:$0xf]
    %v1411 = vld [vmem:[#allocation8 + $0x30] sm:$0xf]
    %v1412 = vld [vmem:[#allocation8 + $0x34] sm:$0xf]
    %v1413 = vld [vmem:[#allocation8 + $0x38] sm:$0xf]
    %v1414 = vld [vmem:[#allocation8 + $0x3c] sm:$0xf]
    %v1415 = vld [vmem:[#allocation8 + $0x40] sm:$0xf]
    %v1416 = vld [vmem:[#allocation8 + $0x44] sm:$0xf]
    %v1417 = vld [vmem:[#allocation8 + $0x48] sm:$0xf]
    %v1418 = vld [vmem:[#allocation8 + $0x4c] sm:$0xf]
    %v1419 = vld [vmem:[#allocation8 + $0x50] sm:$0xf]
    %v1420 = vld [vmem:[#allocation8 + $0x54] sm:$0xf]
    %v1421 = vld [vmem:[#allocation8 + $0x58] sm:$0xf]
    %v1422 = vld [vmem:[#allocation8 + $0x5c] sm:$0xf]
    %v1423 = vld [vmem:[#allocation8 + $0x60] sm:$0xf]
    %v1424 = vld [vmem:[#allocation8 + $0x64] sm:$0xf]
    %v1425 = vld [vmem:[#allocation8 + $0x68] sm:$0xf]
    %v1426 = vld [vmem:[#allocation8 + $0x6c] sm:$0xf]
    %v1427 = vld [vmem:[#allocation8 + $0x70] sm:$0xf]
    %v1428 = vld [vmem:[#allocation8 + $0x74] sm:$0xf]
    %v1429 = vld [vmem:[#allocation8 + $0x78] sm:$0xf]
    %v1430 = vld [vmem:[#allocation8 + $0x7c] sm:$0xf]
    %v1431 = vld [vmem:[%s8] sm:$0x1]
    %v1433 = vlaneseq
    %v1434 = vshrl.u32 %v1433, 7
    %v1435 = vsub.s32 0, %v1434
    %v1436 = vrot.slane %v1431, %v1435
    %v1470 = vunpack.c.l.b16 %v1399
    %v1471 = vunpack.c.l.b16 %v1400
    %v1472 = vunpack.c.l.b16 %v1401
    %v1473 = vunpack.c.l.b16 %v1402
    %v1474 = vunpack.c.l.b16 %v1403
    %v1475 = vunpack.c.l.b16 %v1404
    %v1476 = vunpack.c.l.b16 %v1405
    %v1477 = vunpack.c.l.b16 %v1406
    %v1478 = vunpack.c.l.b16 %v1407
    %v1479 = vunpack.c.l.b16 %v1408
    %v1480 = vunpack.c.l.b16 %v1409
    %v1481 = vunpack.c.l.b16 %v1410
    %v1482 = vunpack.c.l.b16 %v1411
    %v1483 = vunpack.c.l.b16 %v1412
    %v1484 = vunpack.c.l.b16 %v1413
    %v1485 = vunpack.c.l.b16 %v1414
    %v1486 = vunpack.c.l.b16 %v1415
    %v1487 = vunpack.c.l.b16 %v1416
    %v1488 = vunpack.c.l.b16 %v1417
    %v1489 = vunpack.c.l.b16 %v1418
    %v1490 = vunpack.c.l.b16 %v1419
    %v1491 = vunpack.c.l.b16 %v1420
    %v1492 = vunpack.c.l.b16 %v1421
    %v1493 = vunpack.c.l.b16 %v1422
    %v1494 = vunpack.c.l.b16 %v1423
    %v1495 = vunpack.c.l.b16 %v1424
    %v1496 = vunpack.c.l.b16 %v1425
    %v1497 = vunpack.c.l.b16 %v1426
    %v1498 = vunpack.c.l.b16 %v1427
    %v1499 = vunpack.c.l.b16 %v1428
    %v1500 = vunpack.c.l.b16 %v1429
    %v1501 = vunpack.c.l.b16 %v1430
    %v1502 = vpack.c.b16 %v1471, %v1470
    %v1503 = vpack.c.b16 %v1473, %v1472
    %v1504 = vpack.c.b16 %v1475, %v1474
    %v1505 = vpack.c.b16 %v1477, %v1476
    %v1506 = vpack.c.b16 %v1479, %v1478
    %v1507 = vpack.c.b16 %v1481, %v1480
    %v1508 = vpack.c.b16 %v1483, %v1482
    %v1509 = vpack.c.b16 %v1485, %v1484
    %v1510 = vpack.c.b16 %v1487, %v1486
    %v1511 = vpack.c.b16 %v1489, %v1488
    %v1512 = vpack.c.b16 %v1491, %v1490
    %v1513 = vpack.c.b16 %v1493, %v1492
    %v1514 = vpack.c.b16 %v1495, %v1494
    %v1515 = vpack.c.b16 %v1497, %v1496
    %v1516 = vpack.c.b16 %v1499, %v1498
    %v1517 = vpack.c.b16 %v1501, %v1500
    %1534 = vmatprep.subr.bf16.mxu0 0
    %1535 = vmatpush1.bf16.msra.mxu0 %v1502
    %1536 = vmatprep.subr.bf16.mxu0 0
    %1537 = vmatpush1.bf16.msra.mxu0 %v1503
    %1538 = vmatprep.subr.bf16.mxu0 0
    %1539 = vmatpush1.bf16.msra.mxu0 %v1504
    %1540 = vmatprep.subr.bf16.mxu0 0
    %1541 = vmatpush1.bf16.msra.mxu0 %v1505
    %1542 = vmatprep.subr.bf16.mxu0 0
    %1543 = vmatpush1.bf16.msra.mxu0 %v1506
    %1544 = vmatprep.subr.bf16.mxu0 0
    %1545 = vmatpush1.bf16.msra.mxu0 %v1507
    %1546 = vmatprep.subr.bf16.mxu0 0
    %1547 = vmatpush1.bf16.msra.mxu0 %v1508
    %1548 = vmatprep.subr.bf16.mxu0 0
    %1549 = vmatpush1.bf16.msra.mxu0 %v1509
    %1550 = vmatprep.subr.bf16.mxu0 0
    %1551 = vmatpush1.bf16.msra.mxu0 %v1510
    %1552 = vmatprep.subr.bf16.mxu0 0
    %1553 = vmatpush1.bf16.msra.mxu0 %v1511
    %1554 = vmatprep.subr.bf16.mxu0 0
    %1555 = vmatpush1.bf16.msra.mxu0 %v1512
    %1556 = vmatprep.subr.bf16.mxu0 0
    %1557 = vmatpush1.bf16.msra.mxu0 %v1513
    %1558 = vmatprep.subr.bf16.mxu0 0
    %1559 = vmatpush1.bf16.msra.mxu0 %v1514
    %1560 = vmatprep.subr.bf16.mxu0 0
    %1561 = vmatpush1.bf16.msra.mxu0 %v1515
    %1562 = vmatprep.subr.bf16.mxu0 0
    %1563 = vmatpush1.bf16.msra.mxu0 %v1516
    %1564 = vmatprep.subr.bf16.mxu0 0
    %1565 = vmatpush1.bf16.msra.mxu0 %v1517
    %1566 = vmatprep.mubr.bf16.mxu0 %v1398
    %1567 = vmatmul.mubr.bf16.gmra.mrb[0].mxu0 %v1397
    %v1568 = vpop.f32.mrb[0].mxu0
    %v1569 = vadd.f32 %v1436, %v1568
    %v1570 = vpop.f32.mrb[0].mxu0
    %v1571 = vpop.f32.mrb[0].mxu0
    %v1572 = vpop.f32.mrb[0].mxu0
    %1573 = vdwg.mxu0
    %v1574 = vmax.f32 %v1569, 0.0
    %v1575 = vpack.c.bf16 %v1574, %v1574
    %v1576 = vld [vmem:[#allocation10] sm:$0xff]
    %v1577 = vld [vmem:[#allocation10 + $0x8] sm:$0xff]
    %v1578 = vld [vmem:[#allocation10 + $0x10] sm:$0xff]
    %v1579 = vld [vmem:[#allocation10 + $0x18] sm:$0xff]
    %v1580 = vld [vmem:[#allocation10 + $0x20] sm:$0xff]
    %v1581 = vld [vmem:[#allocation10 + $0x28] sm:$0xff]
    %v1582 = vld [vmem:[#allocation10 + $0x30] sm:$0xff]
    %v1583 = vld [vmem:[#allocation10 + $0x38] sm:$0xff]
    %v1584 = vld [vmem:[#allocation10 + $0x40] sm:$0xff]
    %v1585 = vld [vmem:[#allocation10 + $0x48] sm:$0xff]
    %v1586 = vld [vmem:[#allocation10 + $0x50] sm:$0xff]
    %v1587 = vld [vmem:[#allocation10 + $0x58] sm:$0xff]
    %v1588 = vld [vmem:[#allocation10 + $0x60] sm:$0xff]
    %v1589 = vld [vmem:[#allocation10 + $0x68] sm:$0xff]
    %v1590 = vld [vmem:[#allocation10 + $0x70] sm:$0xff]
    %v1591 = vld [vmem:[#allocation10 + $0x78] sm:$0xff]
    %v1592 = vld [vmem:[%s10] sm:$0x3]
    %v1594 = vlaneseq
    %v1595 = vshrl.u32 %v1594, 7
    %v1596 = vsub.s32 0, %v1595
    %v1597 = vrot.slane %v1592, %v1596
    %v1598 = vlaneseq
    %v1599 = vshrl.u32 %v1598, 7
    %v1600 = vsub.s32 1, %v1599
    %v1601 = vrot.slane %v1592, %v1600
    %v1620 = vunpack.c.l.b16 %v1576
    %v1621 = vunpack.c.h.b16 %v1576
    %v1622 = vunpack.c.l.b16 %v1577
    %v1623 = vunpack.c.h.b16 %v1577
    %v1624 = vunpack.c.l.b16 %v1578
    %v1625 = vunpack.c.h.b16 %v1578
    %v1626 = vunpack.c.l.b16 %v1579
    %v1627 = vunpack.c.h.b16 %v1579
    %v1628 = vunpack.c.l.b16 %v1580
    %v1629 = vunpack.c.h.b16 %v1580
    %v1630 = vunpack.c.l.b16 %v1581
    %v1631 = vunpack.c.h.b16 %v1581
    %v1632 = vunpack.c.l.b16 %v1582
    %v1633 = vunpack.c.h.b16 %v1582
    %v1634 = vunpack.c.l.b16 %v1583
    %v1635 = vunpack.c.h.b16 %v1583
    %v1636 = vunpack.c.l.b16 %v1584
    %v1637 = vunpack.c.h.b16 %v1584
    %v1638 = vunpack.c.l.b16 %v1585
    %v1639 = vunpack.c.h.b16 %v1585
    %v1640 = vunpack.c.l.b16 %v1586
    %v1641 = vunpack.c.h.b16 %v1586
    %v1642 = vunpack.c.l.b16 %v1587
    %v1643 = vunpack.c.h.b16 %v1587
    %v1644 = vunpack.c.l.b16 %v1588
    %v1645 = vunpack.c.h.b16 %v1588
    %v1646 = vunpack.c.l.b16 %v1589
    %v1647 = vunpack.c.h.b16 %v1589
    %v1648 = vunpack.c.l.b16 %v1590
    %v1649 = vunpack.c.h.b16 %v1590
    %v1650 = vunpack.c.l.b16 %v1591
    %v1651 = vunpack.c.h.b16 %v1591
    %v1652 = vpack.c.b16 %v1622, %v1620
    %v1653 = vpack.c.b16 %v1623, %v1621
    %v1654 = vpack.c.b16 %v1626, %v1624
    %v1655 = vpack.c.b16 %v1627, %v1625
    %v1656 = vpack.c.b16 %v1630, %v1628
    %v1657 = vpack.c.b16 %v1631, %v1629
    %v1658 = vpack.c.b16 %v1634, %v1632
    %v1659 = vpack.c.b16 %v1635, %v1633
    %v1660 = vpack.c.b16 %v1638, %v1636
    %v1661 = vpack.c.b16 %v1639, %v1637
    %v1662 = vpack.c.b16 %v1642, %v1640
    %v1663 = vpack.c.b16 %v1643, %v1641
    %v1664 = vpack.c.b16 %v1646, %v1644
    %v1665 = vpack.c.b16 %v1647, %v1645
    %v1666 = vpack.c.b16 %v1650, %v1648
    %v1667 = vpack.c.b16 %v1651, %v1649
    %1684 = vmatprep.subr.bf16.mxu0 %v1653
    %1685 = vmatpush1.bf16.msra.mxu0 %v1652
    %1686 = vmatprep.subr.bf16.mxu0 %v1655
    %1687 = vmatpush1.bf16.msra.mxu0 %v1654
    %1688 = vmatprep.subr.bf16.mxu0 %v1657
    %1689 = vmatpush1.bf16.msra.mxu0 %v1656
    %1690 = vmatprep.subr.bf16.mxu0 %v1659
    %1691 = vmatpush1.bf16.msra.mxu0 %v1658
    %1692 = vmatprep.subr.bf16.mxu0 %v1661
    %1693 = vmatpush1.bf16.msra.mxu0 %v1660
    %1694 = vmatprep.subr.bf16.mxu0 %v1663
    %1695 = vmatpush1.bf16.msra.mxu0 %v1662
    %1696 = vmatprep.subr.bf16.mxu0 %v1665
    %1697 = vmatpush1.bf16.msra.mxu0 %v1664
    %1698 = vmatprep.subr.bf16.mxu0 %v1667
    %1699 = vmatpush1.bf16.msra.mxu0 %v1666
    %1700 = vmatprep.subr.bf16.mxu0 0
    %1701 = vmatpush1.bf16.msra.mxu0 0
    %1702 = vmatprep.subr.bf16.mxu0 0
    %1703 = vmatpush1.bf16.msra.mxu0 0
    %1704 = vmatprep.subr.bf16.mxu0 0
    %1705 = vmatpush1.bf16.msra.mxu0 0
    %1706 = vmatprep.subr.bf16.mxu0 0
    %1707 = vmatpush1.bf16.msra.mxu0 0
    %1708 = vmatprep.subr.bf16.mxu0 0
    %1709 = vmatpush1.bf16.msra.mxu0 0
    %1710 = vmatprep.subr.bf16.mxu0 0
    %1711 = vmatpush1.bf16.msra.mxu0 0
    %1712 = vmatprep.subr.bf16.mxu0 0
    %1713 = vmatpush1.bf16.msra.mxu0 0
    %1714 = vmatprep.subr.bf16.mxu0 0
    %1715 = vmatpush1.bf16.msra.mxu0 0
    %1716 = vmatprep.mubr.bf16.mxu0 0
    %1717 = vmatmul.mubr.bf16.gmra.mrb[0].mxu0 %v1575
    %v1718 = vpop.f32.mrb[0].mxu0
    %v1719 = vadd.f32 %v1597, %v1718
    %v1720 = vpop.f32.mrb[0].mxu0
    %v1721 = vadd.f32 %v1601, %v1720
    %v1722 = vpop.f32.mrb[0].mxu0
    %v1723 = vpop.f32.mrb[0].mxu0
    %1724 = vdwg.mxu0
    %v1725 = vmax.f32 %v1719, 0.0
    %v1726 = vmax.f32 %v1721, 0.0
    %v1727 = vpack.c.bf16 %v1725, %v1725
    %v1728 = vpack.c.bf16 %v1726, %v1726
    %v1729 = vld [vmem:[%s11] sm:$0xf]
    %v1730 = vld [vmem:[%s11 + $0x4] sm:$0xf]
    %v1731 = vld [vmem:[%s11 + $0x8] sm:$0xf]
    %v1732 = vld [vmem:[%s11 + $0xc] sm:$0xf]
    %v1733 = vld [vmem:[%s11 + $0x10] sm:$0xf]
    %v1734 = vld [vmem:[%s11 + $0x14] sm:$0xf]
    %v1735 = vld [vmem:[%s11 + $0x18] sm:$0xf]
    %v1736 = vld [vmem:[%s11 + $0x1c] sm:$0xf]
    %v1737 = vld [vmem:[%s11 + $0x20] sm:$0xf]
    %v1738 = vld [vmem:[%s11 + $0x24] sm:$0xf]
    %v1739 = vld [vmem:[%s11 + $0x28] sm:$0xf]
    %v1740 = vld [vmem:[%s11 + $0x2c] sm:$0xf]
    %v1741 = vld [vmem:[%s11 + $0x30] sm:$0xf]
    %v1742 = vld [vmem:[%s11 + $0x34] sm:$0xf]
    %v1743 = vld [vmem:[%s11 + $0x38] sm:$0xf]
    %v1744 = vld [vmem:[%s11 + $0x3c] sm:$0xf]
    %v1745 = vld [vmem:[%s11 + $0x40] sm:$0xf]
    %v1746 = vld [vmem:[%s11 + $0x44] sm:$0xf]
    %v1747 = vld [vmem:[%s11 + $0x48] sm:$0xf]
    %v1748 = vld [vmem:[%s11 + $0x4c] sm:$0xf]
    %v1749 = vld [vmem:[%s11 + $0x50] sm:$0xf]
    %v1750 = vld [vmem:[%s11 + $0x54] sm:$0xf]
    %v1751 = vld [vmem:[%s11 + $0x58] sm:$0xf]
    %v1752 = vld [vmem:[%s11 + $0x5c] sm:$0xf]
    %v1753 = vld [vmem:[%s11 + $0x60] sm:$0xf]
    %v1754 = vld [vmem:[%s11 + $0x64] sm:$0xf]
    %v1755 = vld [vmem:[%s11 + $0x68] sm:$0xf]
    %v1756 = vld [vmem:[%s11 + $0x6c] sm:$0xf]
    %v1757 = vld [vmem:[%s11 + $0x70] sm:$0xf]
    %v1758 = vld [vmem:[%s11 + $0x74] sm:$0xf]
    %v1759 = vld [vmem:[%s11 + $0x78] sm:$0xf]
    %v1760 = vld [vmem:[%s11 + $0x7c] sm:$0xf]
    %v1761 = vld [vmem:[%s12] sm:$0x1]
    %v1763 = vlaneseq
    %v1764 = vshrl.u32 %v1763, 7
    %v1765 = vsub.s32 0, %v1764
    %v1766 = vrot.slane %v1761, %v1765
    %v1800 = vunpack.c.l.b16 %v1729
    %v1801 = vunpack.c.l.b16 %v1730
    %v1802 = vunpack.c.l.b16 %v1731
    %v1803 = vunpack.c.l.b16 %v1732
    %v1804 = vunpack.c.l.b16 %v1733
    %v1805 = vunpack.c.l.b16 %v1734
    %v1806 = vunpack.c.l.b16 %v1735
    %v1807 = vunpack.c.l.b16 %v1736
    %v1808 = vunpack.c.l.b16 %v1737
    %v1809 = vunpack.c.l.b16 %v1738
    %v1810 = vunpack.c.l.b16 %v1739
    %v1811 = vunpack.c.l.b16 %v1740
    %v1812 = vunpack.c.l.b16 %v1741
    %v1813 = vunpack.c.l.b16 %v1742
    %v1814 = vunpack.c.l.b16 %v1743
    %v1815 = vunpack.c.l.b16 %v1744
    %v1816 = vunpack.c.l.b16 %v1745
    %v1817 = vunpack.c.l.b16 %v1746
    %v1818 = vunpack.c.l.b16 %v1747
    %v1819 = vunpack.c.l.b16 %v1748
    %v1820 = vunpack.c.l.b16 %v1749
    %v1821 = vunpack.c.l.b16 %v1750
    %v1822 = vunpack.c.l.b16 %v1751
    %v1823 = vunpack.c.l.b16 %v1752
    %v1824 = vunpack.c.l.b16 %v1753
    %v1825 = vunpack.c.l.b16 %v1754
    %v1826 = vunpack.c.l.b16 %v1755
    %v1827 = vunpack.c.l.b16 %v1756
    %v1828 = vunpack.c.l.b16 %v1757
    %v1829 = vunpack.c.l.b16 %v1758
    %v1830 = vunpack.c.l.b16 %v1759
    %v1831 = vunpack.c.l.b16 %v1760
    %v1832 = vpack.c.b16 %v1801, %v1800
    %v1833 = vpack.c.b16 %v1803, %v1802
    %v1834 = vpack.c.b16 %v1805, %v1804
    %v1835 = vpack.c.b16 %v1807, %v1806
    %v1836 = vpack.c.b16 %v1809, %v1808
    %v1837 = vpack.c.b16 %v1811, %v1810
    %v1838 = vpack.c.b16 %v1813, %v1812
    %v1839 = vpack.c.b16 %v1815, %v1814
    %v1840 = vpack.c.b16 %v1817, %v1816
    %v1841 = vpack.c.b16 %v1819, %v1818
    %v1842 = vpack.c.b16 %v1821, %v1820
    %v1843 = vpack.c.b16 %v1823, %v1822
    %v1844 = vpack.c.b16 %v1825, %v1824
    %v1845 = vpack.c.b16 %v1827, %v1826
    %v1846 = vpack.c.b16 %v1829, %v1828
    %v1847 = vpack.c.b16 %v1831, %v1830
    %1864 = vmatprep.subr.bf16.mxu0 0
    %1865 = vmatpush1.bf16.msra.mxu0 %v1832
    %1866 = vmatprep.subr.bf16.mxu0 0
    %1867 = vmatpush1.bf16.msra.mxu0 %v1833
    %1868 = vmatprep.subr.bf16.mxu0 0
    %1869 = vmatpush1.bf16.msra.mxu0 %v1834
    %1870 = vmatprep.subr.bf16.mxu0 0
    %1871 = vmatpush1.bf16.msra.mxu0 %v1835
    %1872 = vmatprep.subr.bf16.mxu0 0
    %1873 = vmatpush1.bf16.msra.mxu0 %v1836
    %1874 = vmatprep.subr.bf16.mxu0 0
    %1875 = vmatpush1.bf16.msra.mxu0 %v1837
    %1876 = vmatprep.subr.bf16.mxu0 0
    %1877 = vmatpush1.bf16.msra.mxu0 %v1838
    %1878 = vmatprep.subr.bf16.mxu0 0
    %1879 = vmatpush1.bf16.msra.mxu0 %v1839
    %1880 = vmatprep.subr.bf16.mxu0 0
    %1881 = vmatpush1.bf16.msra.mxu0 %v1840
    %1882 = vmatprep.subr.bf16.mxu0 0
    %1883 = vmatpush1.bf16.msra.mxu0 %v1841
    %1884 = vmatprep.subr.bf16.mxu0 0
    %1885 = vmatpush1.bf16.msra.mxu0 %v1842
    %1886 = vmatprep.subr.bf16.mxu0 0
    %1887 = vmatpush1.bf16.msra.mxu0 %v1843
    %1888 = vmatprep.subr.bf16.mxu0 0
    %1889 = vmatpush1.bf16.msra.mxu0 %v1844
    %1890 = vmatprep.subr.bf16.mxu0 0
    %1891 = vmatpush1.bf16.msra.mxu0 %v1845
    %1892 = vmatprep.subr.bf16.mxu0 0
    %1893 = vmatpush1.bf16.msra.mxu0 %v1846
    %1894 = vmatprep.subr.bf16.mxu0 0
    %1895 = vmatpush1.bf16.msra.mxu0 %v1847
    %1896 = vmatprep.mubr.bf16.mxu0 %v1728
    %1897 = vmatmul.mubr.bf16.gmra.mrb[0].mxu0 %v1727
    %v1898 = vpop.f32.mrb[0].mxu0
    %v1899 = vadd.f32 %v1766, %v1898
    %v1900 = vpop.f32.mrb[0].mxu0
    %v1901 = vpop.f32.mrb[0].mxu0
    %v1902 = vpop.f32.mrb[0].mxu0
    %1903 = vdwg.mxu0
    %v1904 = vxor.u32 %v1899, 2147483648
    %v1905 = vmul.f32 %v1904, 1.442695
    %v1906 = vpow.pop %v1905
    %v1907 = vadd.f32 %v1906, 1.0
    %v1908 = vrcp.pop %v1907
    %v1909 = vmul.f32 1.0, %v1908
    %vm1910 = vcmask 64512
    %1911 = vst.msk [vmem:[#allocation11] sm:$0xff] %vm1910, %v1909
    // Predicated region
    $region74: #{tpu_custom_call.1} parent=1 // pred_check
      _
    $region75: #{tpu_custom_call.1} parent=1 // pred_check_branch
      %1913 = sbr.rel (0) target = $region77
    $region76: #{tpu_custom_call.1} parent=1 // pred_region
      %s1915 = ssub.s32 128, 128
      %1916 = vsyncadd [#allocation4], %s1915
      %s1918 = sshll.u32 [#allocation11], 4
      %s1919 = int_to_ptr.vmem [resolvable:$true] %s1918
      %1921 = dma.vmem_to_hbm [thread:$0]  %s1919, 128, %s13, [#allocation4]
    $region77: #{tpu_custom_call.1} parent=1 // pred_fallthru
      _
    // Predicated region
    $region78: #{tpu_custom_call.1} parent=1 // pred_check
      _
    $region79: #{tpu_custom_call.1} parent=1 // pred_check_branch
      %1923 = sbr.rel (0) target = $region81
    $region80: #{tpu_custom_call.1} parent=1 // pred_region
      %1924 = dma.done [#allocation4], 128
    $region81: #{tpu_custom_call.1} parent=1 // pred_fallthru
      _
    %1925 = vsyncpa [#allocation3], 1
    %1926 = vsyncpa [#allocation6], 1
    %1927 = vsyncpa [#allocation9], 1
    %1928 = vsyncpa [#allocation4], 1

</llo_original>
